<compile_context>
chip_gen: v6e
topology: v6e:2x2x1
jax: 0.10.0
libtpu: 0.0.40
codegen_flags: <defaults>
</compile_context>

<pallas_src>
import jax
import jax.numpy as jnp
from jax import lax
from jax.experimental import pallas as pl
from jax.experimental.pallas import tpu as pltpu

QUEUE_SIZE = 1200
FEAT_DIM = 7
COMBINE_DIM = 4
HID_A = 256
HID_B = 64
NUM_CLASSES = 2
LANE = 128


def _combine_kernel(x_ref, wc_ref, bc_ref, ws_ref, bs_ref, s_ref):
    """Per-(batch,queue) 7 -> 4 -> ReLU -> 1 MLP, lane-dense over the queue axis.

    x_ref : (1, FEAT_DIM, QS) VMEM   one batch row, queue on lanes
    wc_ref: (COMBINE_DIM, FEAT_DIM) SMEM   fc_combine.weight
    bc_ref: (1, COMBINE_DIM)        SMEM   fc_combine.bias
    ws_ref: (1, COMBINE_DIM)        SMEM   fc_step.weight
    bs_ref: (1, 1)                  SMEM   fc_step.bias
    s_ref : (1, 1, QS) VMEM
    """
    q = x_ref.shape[-1]
    x = x_ref[0].astype(jnp.float32)                          # (FEAT_DIM, QS), lane-dense
    s = jnp.full((1, q), bs_ref[0, 0], dtype=jnp.float32)
    for k in range(COMBINE_DIM):                              # fully unrolled VPU work
        hk = jnp.full((1, q), bc_ref[0, k], dtype=jnp.float32)
        for j in range(FEAT_DIM):
            hk = hk + wc_ref[k, j] * x[j:j + 1, :]
        s = s + ws_ref[0, k] * jnp.maximum(hk, 0.0)           # ReLU then fc_step
    s_ref[0] = s.astype(s_ref.dtype)


def _head_kernel(s_ref, waT_ref, ba_ref, wbT_ref, bb_ref, wcT_ref, bc_ref, out_ref):
    """1200 -> 256 -> ReLU -> 64 -> ReLU -> (2 padded to 128 lanes) on the MXU."""
    s = s_ref[...].astype(jnp.float32)                                    # (TB, QS)
    h = jnp.dot(s, waT_ref[...].astype(jnp.float32),
                preferred_element_type=jnp.float32) + ba_ref[...].astype(jnp.float32)
    h = jnp.maximum(h, 0.0)                                               # (TB, 256)
    h = jnp.dot(h, wbT_ref[...].astype(jnp.float32),
                preferred_element_type=jnp.float32) + bb_ref[...].astype(jnp.float32)
    h = jnp.maximum(h, 0.0)                                               # (TB, 64)
    out = jnp.dot(h, wcT_ref[...].astype(jnp.float32),
                  preferred_element_type=jnp.float32) + bc_ref[...].astype(jnp.float32)
    out_ref[...] = out.astype(out_ref.dtype)                              # (TB, 128) lane-dense store


def struct2_forward(x, params):
    """x: (B, QS, FD) -> logits (B, 2). Matches Struct2Model.forward."""
    b, qs, fd = x.shape
    assert qs == QUEUE_SIZE and fd == FEAT_DIM

    # ---- wrapper-side layout plumbing (tiny, one-time) ----
    xt = jnp.transpose(x, (0, 2, 1))                                      # (B, FD, QS)
    wc = params["wc"].astype(jnp.float32)                                 # (4, 7)
    bc = params["bc"].reshape(1, COMBINE_DIM).astype(jnp.float32)
    ws = params["ws"].reshape(1, COMBINE_DIM).astype(jnp.float32)
    bs = params["bs"].reshape(1, 1).astype(jnp.float32)
    waT = jnp.transpose(params["wA"])                                     # (1200, 256)
    ba = params["bA"].reshape(1, HID_A)
    wbT = jnp.transpose(params["wB"])                                     # (256, 64)
    bb = params["bB"].reshape(1, HID_B)
    # zero-pad the 2-wide output layer to 128 lanes -> lane-dense output store
    wcT = jnp.zeros((HID_B, LANE), jnp.float32).at[:, :NUM_CLASSES].set(
        jnp.transpose(params["wC"]).astype(jnp.float32))
    bc2 = jnp.zeros((1, LANE), jnp.float32).at[:, :NUM_CLASSES].set(
        params["bC"].reshape(1, NUM_CLASSES).astype(jnp.float32))

    # ---- stage 1: per-element combine (grid over batch, lane-dense queue axis) ----
    smem = pl.BlockSpec(memory_space=pltpu.MemorySpace.SMEM)
    s = pl.pallas_call(
        _combine_kernel,
        out_shape=jax.ShapeDtypeStruct((b, 1, qs), jnp.float32),
        grid=(b,),
        in_specs=[
            pl.BlockSpec((1, FEAT_DIM, qs), lambda i: (i, 0, 0)),
            smem, smem, smem, smem,
        ],
        out_specs=pl.BlockSpec((1, 1, qs), lambda i: (i, 0, 0)),
        compiler_params=pltpu.CompilerParams(dimension_semantics=("parallel",)),
    )(xt, wc, bc, ws, bs)
    s = s.reshape(b, qs)

    # ---- stage 2: MLP head (grid over batch tiles, weights resident in VMEM ~1.3 MiB) ----
    tb = b
    for cand in (128, 64, 32, 16, 8):
        if b % cand == 0:
            tb = cand
            break
    logits_padded = pl.pallas_call(
        _head_kernel,
        out_shape=jax.ShapeDtypeStruct((b, LANE), jnp.float32),
        grid=(b // tb,),
        in_specs=[
            pl.BlockSpec((tb, qs), lambda i: (i, 0)),
            pl.BlockSpec((qs, HID_A), lambda i: (0, 0)),
            pl.BlockSpec((1, HID_A), lambda i: (0, 0)),
            pl.BlockSpec((HID_A, HID_B), lambda i: (0, 0)),
            pl.BlockSpec((1, HID_B), lambda i: (0, 0)),
            pl.BlockSpec((HID_B, LANE), lambda i: (0, 0)),
            pl.BlockSpec((1, LANE), lambda i: (0, 0)),
        ],
        out_specs=pl.BlockSpec((tb, LANE), lambda i: (i, 0)),
        compiler_params=pltpu.CompilerParams(dimension_semantics=("parallel",)),
    )(s, waT, ba, wbT, bb, wcT, bc2)
    return logits_padded[:, :NUM_CLASSES]


def _reference_forward(x, params):
    # pure-JAX replica of Struct2Model.forward (high precision for comparison)
    hp = lax.Precision.HIGHEST
    x = x.astype(jnp.float32)
    b, qs, fd = x.shape
    x2d = x.reshape(b * qs, fd)
    h = jax.nn.relu(jnp.dot(x2d, params["wc"].T, precision=hp) + params["bc"])
    s = (jnp.dot(h, params["ws"].T, precision=hp) + params["bs"]).reshape(b, qs)
    h = jax.nn.relu(jnp.dot(s, params["wA"].T, precision=hp) + params["bA"])
    h = jax.nn.relu(jnp.dot(h, params["wB"].T, precision=hp) + params["bB"])
    return jnp.dot(h, params["wC"].T, precision=hp) + params["bC"]


def _init_params(key):
    # deterministic torch.nn.Linear-style init: U(-1/sqrt(fan_in), 1/sqrt(fan_in))
    def linear(k, out_dim, in_dim):
        kw, kb = jax.random.split(k)
        bound = 1.0 / (in_dim ** 0.5)
        w = jax.random.uniform(kw, (out_dim, in_dim), jnp.float32, -bound, bound)
        b_ = jax.random.uniform(kb, (out_dim,), jnp.float32, -bound, bound)
        return w, b_

    ks = jax.random.split(key, 5)
    wc, bc = linear(ks[0], COMBINE_DIM, FEAT_DIM)
    ws, bs = linear(ks[1], 1, COMBINE_DIM)
    wA, bA = linear(ks[2], HID_A, QUEUE_SIZE)
    wB, bB = linear(ks[3], HID_B, HID_A)
    wC, bC = linear(ks[4], NUM_CLASSES, HID_B)
    return dict(wc=wc, bc=bc, ws=ws, bs=bs, wA=wA, bA=bA, wB=wB, bB=bB, wC=wC, bC=bC)


if __name__ == "__main__":
    key = jax.random.PRNGKey(0)
    k_param, k_x = jax.random.split(key)

    B = 4                                   # small batch; queue/feature dims fixed by the module
    params = _init_params(k_param)
    x = jax.random.normal(k_x, (B, QUEUE_SIZE, FEAT_DIM), dtype=jnp.float32)

    logits = struct2_forward(x, params)
    jax.block_until_ready(logits)

    ref = _reference_forward(x, params)
    assert logits.shape == (B, NUM_CLASSES), logits.shape
    assert jnp.allclose(logits, ref, atol=2e-3, rtol=2e-3), (logits, ref)

    print("KERNEL_OK")
</pallas_src>

<mosaic_0001>
module attributes {stable_mosaic.version = 11 : i64} {
  func.func @_combine_kernel(%arg0: i32, %arg1: memref<1x7x1200xf32, #tpu.memory_space<vmem>>, %arg2: memref<4x7xf32, #tpu.memory_space<smem>>, %arg3: memref<1x4xf32, #tpu.memory_space<smem>>, %arg4: memref<1x4xf32, #tpu.memory_space<smem>>, %arg5: memref<1x1xf32, #tpu.memory_space<smem>>, %arg6: memref<1x1x1200xf32, #tpu.memory_space<vmem>>) attributes {dimension_semantics = [#tpu.dimension_semantics<parallel>], iteration_bounds = array<i64: 4>, scalar_prefetch = 0 : i64, scratch_operands = 0 : i64, tpu.core_type = #tpu.core_type<tc>, window_params = [{transform_indices = @transform_0, window_bounds = array<i64: 1, 7, 1200>}, {transform_indices = @transform_1, window_bounds = array<i64: 4, 7>}, {transform_indices = @transform_2, window_bounds = array<i64: 1, 4>}, {transform_indices = @transform_3, window_bounds = array<i64: 1, 4>}, {transform_indices = @transform_4, window_bounds = array<i64: 1, 1>}, {transform_indices = @transform_5, window_bounds = array<i64: 1, 1, 1200>}]} {
    %c0 = arith.constant 0 : index
    %c0_0 = arith.constant 0 : index
    %c0_1 = arith.constant 0 : index
    %0 = vector.load %arg1[%c0, %c0_0, %c0_1] : memref<1x7x1200xf32, #tpu.memory_space<vmem>>, vector<1x7x1200xf32>
    %1 = vector.shape_cast %0 : vector<1x7x1200xf32> to vector<7x1200xf32>
    %c0_2 = arith.constant 0 : index
    %c0_3 = arith.constant 0 : index
    %2 = memref.load %arg5[%c0_2, %c0_3] : memref<1x1xf32, #tpu.memory_space<smem>>
    %3 = vector.broadcast %2 : f32 to vector<1x1200xf32>
    %c0_4 = arith.constant 0 : index
    %c0_5 = arith.constant 0 : index
    %4 = memref.load %arg3[%c0_4, %c0_5] : memref<1x4xf32, #tpu.memory_space<smem>>
    %5 = vector.broadcast %4 : f32 to vector<1x1200xf32>
    %c0_6 = arith.constant 0 : index
    %c0_7 = arith.constant 0 : index
    %6 = memref.load %arg2[%c0_6, %c0_7] : memref<4x7xf32, #tpu.memory_space<smem>>
    %7 = vector.extract_strided_slice %1 {offsets = [0, 0], sizes = [1, 1200], strides = [1, 1]} : vector<7x1200xf32> to vector<1x1200xf32>
    %8 = vector.broadcast %6 : f32 to vector<1x1200xf32>
    %9 = arith.mulf %8, %7 : vector<1x1200xf32>
    %10 = arith.addf %5, %9 : vector<1x1200xf32>
    %c0_8 = arith.constant 0 : index
    %c1 = arith.constant 1 : index
    %11 = memref.load %arg2[%c0_8, %c1] : memref<4x7xf32, #tpu.memory_space<smem>>
    %12 = vector.extract_strided_slice %1 {offsets = [1, 0], sizes = [1, 1200], strides = [1, 1]} : vector<7x1200xf32> to vector<1x1200xf32>
    %13 = vector.broadcast %11 : f32 to vector<1x1200xf32>
    %14 = arith.mulf %13, %12 : vector<1x1200xf32>
    %15 = arith.addf %10, %14 : vector<1x1200xf32>
    %c0_9 = arith.constant 0 : index
    %c2 = arith.constant 2 : index
    %16 = memref.load %arg2[%c0_9, %c2] : memref<4x7xf32, #tpu.memory_space<smem>>
    %17 = vector.extract_strided_slice %1 {offsets = [2, 0], sizes = [1, 1200], strides = [1, 1]} : vector<7x1200xf32> to vector<1x1200xf32>
    %18 = vector.broadcast %16 : f32 to vector<1x1200xf32>
    %19 = arith.mulf %18, %17 : vector<1x1200xf32>
    %20 = arith.addf %15, %19 : vector<1x1200xf32>
    %c0_10 = arith.constant 0 : index
    %c3 = arith.constant 3 : index
    %21 = memref.load %arg2[%c0_10, %c3] : memref<4x7xf32, #tpu.memory_space<smem>>
    %22 = vector.extract_strided_slice %1 {offsets = [3, 0], sizes = [1, 1200], strides = [1, 1]} : vector<7x1200xf32> to vector<1x1200xf32>
    %23 = vector.broadcast %21 : f32 to vector<1x1200xf32>
    %24 = arith.mulf %23, %22 : vector<1x1200xf32>
    %25 = arith.addf %20, %24 : vector<1x1200xf32>
    %c0_11 = arith.constant 0 : index
    %c4 = arith.constant 4 : index
    %26 = memref.load %arg2[%c0_11, %c4] : memref<4x7xf32, #tpu.memory_space<smem>>
    %27 = vector.extract_strided_slice %1 {offsets = [4, 0], sizes = [1, 1200], strides = [1, 1]} : vector<7x1200xf32> to vector<1x1200xf32>
    %28 = vector.broadcast %26 : f32 to vector<1x1200xf32>
    %29 = arith.mulf %28, %27 : vector<1x1200xf32>
    %30 = arith.addf %25, %29 : vector<1x1200xf32>
    %c0_12 = arith.constant 0 : index
    %c5 = arith.constant 5 : index
    %31 = memref.load %arg2[%c0_12, %c5] : memref<4x7xf32, #tpu.memory_space<smem>>
    %32 = vector.extract_strided_slice %1 {offsets = [5, 0], sizes = [1, 1200], strides = [1, 1]} : vector<7x1200xf32> to vector<1x1200xf32>
    %33 = vector.broadcast %31 : f32 to vector<1x1200xf32>
    %34 = arith.mulf %33, %32 : vector<1x1200xf32>
    %35 = arith.addf %30, %34 : vector<1x1200xf32>
    %c0_13 = arith.constant 0 : index
    %c6 = arith.constant 6 : index
    %36 = memref.load %arg2[%c0_13, %c6] : memref<4x7xf32, #tpu.memory_space<smem>>
    %37 = vector.extract_strided_slice %1 {offsets = [6, 0], sizes = [1, 1200], strides = [1, 1]} : vector<7x1200xf32> to vector<1x1200xf32>
    %38 = vector.broadcast %36 : f32 to vector<1x1200xf32>
    %39 = arith.mulf %38, %37 : vector<1x1200xf32>
    %40 = arith.addf %35, %39 : vector<1x1200xf32>
    %c0_14 = arith.constant 0 : index
    %c0_15 = arith.constant 0 : index
    %41 = memref.load %arg4[%c0_14, %c0_15] : memref<1x4xf32, #tpu.memory_space<smem>>
    %cst = arith.constant 0.000000e+00 : f32
    %42 = vector.broadcast %cst : f32 to vector<1x1200xf32>
    %43 = arith.maximumf %40, %42 : vector<1x1200xf32>
    %44 = vector.broadcast %41 : f32 to vector<1x1200xf32>
    %45 = arith.mulf %44, %43 : vector<1x1200xf32>
    %46 = arith.addf %3, %45 : vector<1x1200xf32>
    %c0_16 = arith.constant 0 : index
    %c1_17 = arith.constant 1 : index
    %47 = memref.load %arg3[%c0_16, %c1_17] : memref<1x4xf32, #tpu.memory_space<smem>>
    %48 = vector.broadcast %47 : f32 to vector<1x1200xf32>
    %c1_18 = arith.constant 1 : index
    %c0_19 = arith.constant 0 : index
    %49 = memref.load %arg2[%c1_18, %c0_19] : memref<4x7xf32, #tpu.memory_space<smem>>
    %50 = vector.extract_strided_slice %1 {offsets = [0, 0], sizes = [1, 1200], strides = [1, 1]} : vector<7x1200xf32> to vector<1x1200xf32>
    %51 = vector.broadcast %49 : f32 to vector<1x1200xf32>
    %52 = arith.mulf %51, %50 : vector<1x1200xf32>
    %53 = arith.addf %48, %52 : vector<1x1200xf32>
    %c1_20 = arith.constant 1 : index
    %c1_21 = arith.constant 1 : index
    %54 = memref.load %arg2[%c1_20, %c1_21] : memref<4x7xf32, #tpu.memory_space<smem>>
    %55 = vector.extract_strided_slice %1 {offsets = [1, 0], sizes = [1, 1200], strides = [1, 1]} : vector<7x1200xf32> to vector<1x1200xf32>
    %56 = vector.broadcast %54 : f32 to vector<1x1200xf32>
    %57 = arith.mulf %56, %55 : vector<1x1200xf32>
    %58 = arith.addf %53, %57 : vector<1x1200xf32>
    %c1_22 = arith.constant 1 : index
    %c2_23 = arith.constant 2 : index
    %59 = memref.load %arg2[%c1_22, %c2_23] : memref<4x7xf32, #tpu.memory_space<smem>>
    %60 = vector.extract_strided_slice %1 {offsets = [2, 0], sizes = [1, 1200], strides = [1, 1]} : vector<7x1200xf32> to vector<1x1200xf32>
    %61 = vector.broadcast %59 : f32 to vector<1x1200xf32>
    %62 = arith.mulf %61, %60 : vector<1x1200xf32>
    %63 = arith.addf %58, %62 : vector<1x1200xf32>
    %c1_24 = arith.constant 1 : index
    %c3_25 = arith.constant 3 : index
    %64 = memref.load %arg2[%c1_24, %c3_25] : memref<4x7xf32, #tpu.memory_space<smem>>
    %65 = vector.extract_strided_slice %1 {offsets = [3, 0], sizes = [1, 1200], strides = [1, 1]} : vector<7x1200xf32> to vector<1x1200xf32>
    %66 = vector.broadcast %64 : f32 to vector<1x1200xf32>
    %67 = arith.mulf %66, %65 : vector<1x1200xf32>
    %68 = arith.addf %63, %67 : vector<1x1200xf32>
    %c1_26 = arith.constant 1 : index
    %c4_27 = arith.constant 4 : index
    %69 = memref.load %arg2[%c1_26, %c4_27] : memref<4x7xf32, #tpu.memory_space<smem>>
    %70 = vector.extract_strided_slice %1 {offsets = [4, 0], sizes = [1, 1200], strides = [1, 1]} : vector<7x1200xf32> to vector<1x1200xf32>
    %71 = vector.broadcast %69 : f32 to vector<1x1200xf32>
    %72 = arith.mulf %71, %70 : vector<1x1200xf32>
    %73 = arith.addf %68, %72 : vector<1x1200xf32>
    %c1_28 = arith.constant 1 : index
    %c5_29 = arith.constant 5 : index
    %74 = memref.load %arg2[%c1_28, %c5_29] : memref<4x7xf32, #tpu.memory_space<smem>>
    %75 = vector.extract_strided_slice %1 {offsets = [5, 0], sizes = [1, 1200], strides = [1, 1]} : vector<7x1200xf32> to vector<1x1200xf32>
    %76 = vector.broadcast %74 : f32 to vector<1x1200xf32>
    %77 = arith.mulf %76, %75 : vector<1x1200xf32>
    %78 = arith.addf %73, %77 : vector<1x1200xf32>
    %c1_30 = arith.constant 1 : index
    %c6_31 = arith.constant 6 : index
    %79 = memref.load %arg2[%c1_30, %c6_31] : memref<4x7xf32, #tpu.memory_space<smem>>
    %80 = vector.extract_strided_slice %1 {offsets = [6, 0], sizes = [1, 1200], strides = [1, 1]} : vector<7x1200xf32> to vector<1x1200xf32>
    %81 = vector.broadcast %79 : f32 to vector<1x1200xf32>
    %82 = arith.mulf %81, %80 : vector<1x1200xf32>
    %83 = arith.addf %78, %82 : vector<1x1200xf32>
    %c0_32 = arith.constant 0 : index
    %c1_33 = arith.constant 1 : index
    %84 = memref.load %arg4[%c0_32, %c1_33] : memref<1x4xf32, #tpu.memory_space<smem>>
    %cst_34 = arith.constant 0.000000e+00 : f32
    %85 = vector.broadcast %cst_34 : f32 to vector<1x1200xf32>
    %86 = arith.maximumf %83, %85 : vector<1x1200xf32>
    %87 = vector.broadcast %84 : f32 to vector<1x1200xf32>
    %88 = arith.mulf %87, %86 : vector<1x1200xf32>
    %89 = arith.addf %46, %88 : vector<1x1200xf32>
    %c0_35 = arith.constant 0 : index
    %c2_36 = arith.constant 2 : index
    %90 = memref.load %arg3[%c0_35, %c2_36] : memref<1x4xf32, #tpu.memory_space<smem>>
    %91 = vector.broadcast %90 : f32 to vector<1x1200xf32>
    %c2_37 = arith.constant 2 : index
    %c0_38 = arith.constant 0 : index
    %92 = memref.load %arg2[%c2_37, %c0_38] : memref<4x7xf32, #tpu.memory_space<smem>>
    %93 = vector.extract_strided_slice %1 {offsets = [0, 0], sizes = [1, 1200], strides = [1, 1]} : vector<7x1200xf32> to vector<1x1200xf32>
    %94 = vector.broadcast %92 : f32 to vector<1x1200xf32>
    %95 = arith.mulf %94, %93 : vector<1x1200xf32>
    %96 = arith.addf %91, %95 : vector<1x1200xf32>
    %c2_39 = arith.constant 2 : index
    %c1_40 = arith.constant 1 : index
    %97 = memref.load %arg2[%c2_39, %c1_40] : memref<4x7xf32, #tpu.memory_space<smem>>
    %98 = vector.extract_strided_slice %1 {offsets = [1, 0], sizes = [1, 1200], strides = [1, 1]} : vector<7x1200xf32> to vector<1x1200xf32>
    %99 = vector.broadcast %97 : f32 to vector<1x1200xf32>
    %100 = arith.mulf %99, %98 : vector<1x1200xf32>
    %101 = arith.addf %96, %100 : vector<1x1200xf32>
    %c2_41 = arith.constant 2 : index
    %c2_42 = arith.constant 2 : index
    %102 = memref.load %arg2[%c2_41, %c2_42] : memref<4x7xf32, #tpu.memory_space<smem>>
    %103 = vector.extract_strided_slice %1 {offsets = [2, 0], sizes = [1, 1200], strides = [1, 1]} : vector<7x1200xf32> to vector<1x1200xf32>
    %104 = vector.broadcast %102 : f32 to vector<1x1200xf32>
    %105 = arith.mulf %104, %103 : vector<1x1200xf32>
    %106 = arith.addf %101, %105 : vector<1x1200xf32>
    %c2_43 = arith.constant 2 : index
    %c3_44 = arith.constant 3 : index
    %107 = memref.load %arg2[%c2_43, %c3_44] : memref<4x7xf32, #tpu.memory_space<smem>>
    %108 = vector.extract_strided_slice %1 {offsets = [3, 0], sizes = [1, 1200], strides = [1, 1]} : vector<7x1200xf32> to vector<1x1200xf32>
    %109 = vector.broadcast %107 : f32 to vector<1x1200xf32>
    %110 = arith.mulf %109, %108 : vector<1x1200xf32>
    %111 = arith.addf %106, %110 : vector<1x1200xf32>
    %c2_45 = arith.constant 2 : index
    %c4_46 = arith.constant 4 : index
    %112 = memref.load %arg2[%c2_45, %c4_46] : memref<4x7xf32, #tpu.memory_space<smem>>
    %113 = vector.extract_strided_slice %1 {offsets = [4, 0], sizes = [1, 1200], strides = [1, 1]} : vector<7x1200xf32> to vector<1x1200xf32>
    %114 = vector.broadcast %112 : f32 to vector<1x1200xf32>
    %115 = arith.mulf %114, %113 : vector<1x1200xf32>
    %116 = arith.addf %111, %115 : vector<1x1200xf32>
    %c2_47 = arith.constant 2 : index
    %c5_48 = arith.constant 5 : index
    %117 = memref.load %arg2[%c2_47, %c5_48] : memref<4x7xf32, #tpu.memory_space<smem>>
    %118 = vector.extract_strided_slice %1 {offsets = [5, 0], sizes = [1, 1200], strides = [1, 1]} : vector<7x1200xf32> to vector<1x1200xf32>
    %119 = vector.broadcast %117 : f32 to vector<1x1200xf32>
    %120 = arith.mulf %119, %118 : vector<1x1200xf32>
    %121 = arith.addf %116, %120 : vector<1x1200xf32>
    %c2_49 = arith.constant 2 : index
    %c6_50 = arith.constant 6 : index
    %122 = memref.load %arg2[%c2_49, %c6_50] : memref<4x7xf32, #tpu.memory_space<smem>>
    %123 = vector.extract_strided_slice %1 {offsets = [6, 0], sizes = [1, 1200], strides = [1, 1]} : vector<7x1200xf32> to vector<1x1200xf32>
    %124 = vector.broadcast %122 : f32 to vector<1x1200xf32>
    %125 = arith.mulf %124, %123 : vector<1x1200xf32>
    %126 = arith.addf %121, %125 : vector<1x1200xf32>
    %c0_51 = arith.constant 0 : index
    %c2_52 = arith.constant 2 : index
    %127 = memref.load %arg4[%c0_51, %c2_52] : memref<1x4xf32, #tpu.memory_space<smem>>
    %cst_53 = arith.constant 0.000000e+00 : f32
    %128 = vector.broadcast %cst_53 : f32 to vector<1x1200xf32>
    %129 = arith.maximumf %126, %128 : vector<1x1200xf32>
    %130 = vector.broadcast %127 : f32 to vector<1x1200xf32>
    %131 = arith.mulf %130, %129 : vector<1x1200xf32>
    %132 = arith.addf %89, %131 : vector<1x1200xf32>
    %c0_54 = arith.constant 0 : index
    %c3_55 = arith.constant 3 : index
    %133 = memref.load %arg3[%c0_54, %c3_55] : memref<1x4xf32, #tpu.memory_space<smem>>
    %134 = vector.broadcast %133 : f32 to vector<1x1200xf32>
    %c3_56 = arith.constant 3 : index
    %c0_57 = arith.constant 0 : index
    %135 = memref.load %arg2[%c3_56, %c0_57] : memref<4x7xf32, #tpu.memory_space<smem>>
    %136 = vector.extract_strided_slice %1 {offsets = [0, 0], sizes = [1, 1200], strides = [1, 1]} : vector<7x1200xf32> to vector<1x1200xf32>
    %137 = vector.broadcast %135 : f32 to vector<1x1200xf32>
    %138 = arith.mulf %137, %136 : vector<1x1200xf32>
    %139 = arith.addf %134, %138 : vector<1x1200xf32>
    %c3_58 = arith.constant 3 : index
    %c1_59 = arith.constant 1 : index
    %140 = memref.load %arg2[%c3_58, %c1_59] : memref<4x7xf32, #tpu.memory_space<smem>>
    %141 = vector.extract_strided_slice %1 {offsets = [1, 0], sizes = [1, 1200], strides = [1, 1]} : vector<7x1200xf32> to vector<1x1200xf32>
    %142 = vector.broadcast %140 : f32 to vector<1x1200xf32>
    %143 = arith.mulf %142, %141 : vector<1x1200xf32>
    %144 = arith.addf %139, %143 : vector<1x1200xf32>
    %c3_60 = arith.constant 3 : index
    %c2_61 = arith.constant 2 : index
    %145 = memref.load %arg2[%c3_60, %c2_61] : memref<4x7xf32, #tpu.memory_space<smem>>
    %146 = vector.extract_strided_slice %1 {offsets = [2, 0], sizes = [1, 1200], strides = [1, 1]} : vector<7x1200xf32> to vector<1x1200xf32>
    %147 = vector.broadcast %145 : f32 to vector<1x1200xf32>
    %148 = arith.mulf %147, %146 : vector<1x1200xf32>
    %149 = arith.addf %144, %148 : vector<1x1200xf32>
    %c3_62 = arith.constant 3 : index
    %c3_63 = arith.constant 3 : index
    %150 = memref.load %arg2[%c3_62, %c3_63] : memref<4x7xf32, #tpu.memory_space<smem>>
    %151 = vector.extract_strided_slice %1 {offsets = [3, 0], sizes = [1, 1200], strides = [1, 1]} : vector<7x1200xf32> to vector<1x1200xf32>
    %152 = vector.broadcast %150 : f32 to vector<1x1200xf32>
    %153 = arith.mulf %152, %151 : vector<1x1200xf32>
    %154 = arith.addf %149, %153 : vector<1x1200xf32>
    %c3_64 = arith.constant 3 : index
    %c4_65 = arith.constant 4 : index
    %155 = memref.load %arg2[%c3_64, %c4_65] : memref<4x7xf32, #tpu.memory_space<smem>>
    %156 = vector.extract_strided_slice %1 {offsets = [4, 0], sizes = [1, 1200], strides = [1, 1]} : vector<7x1200xf32> to vector<1x1200xf32>
    %157 = vector.broadcast %155 : f32 to vector<1x1200xf32>
    %158 = arith.mulf %157, %156 : vector<1x1200xf32>
    %159 = arith.addf %154, %158 : vector<1x1200xf32>
    %c3_66 = arith.constant 3 : index
    %c5_67 = arith.constant 5 : index
    %160 = memref.load %arg2[%c3_66, %c5_67] : memref<4x7xf32, #tpu.memory_space<smem>>
    %161 = vector.extract_strided_slice %1 {offsets = [5, 0], sizes = [1, 1200], strides = [1, 1]} : vector<7x1200xf32> to vector<1x1200xf32>
    %162 = vector.broadcast %160 : f32 to vector<1x1200xf32>
    %163 = arith.mulf %162, %161 : vector<1x1200xf32>
    %164 = arith.addf %159, %163 : vector<1x1200xf32>
    %c3_68 = arith.constant 3 : index
    %c6_69 = arith.constant 6 : index
    %165 = memref.load %arg2[%c3_68, %c6_69] : memref<4x7xf32, #tpu.memory_space<smem>>
    %166 = vector.extract_strided_slice %1 {offsets = [6, 0], sizes = [1, 1200], strides = [1, 1]} : vector<7x1200xf32> to vector<1x1200xf32>
    %167 = vector.broadcast %165 : f32 to vector<1x1200xf32>
    %168 = arith.mulf %167, %166 : vector<1x1200xf32>
    %169 = arith.addf %164, %168 : vector<1x1200xf32>
    %c0_70 = arith.constant 0 : index
    %c3_71 = arith.constant 3 : index
    %170 = memref.load %arg4[%c0_70, %c3_71] : memref<1x4xf32, #tpu.memory_space<smem>>
    %cst_72 = arith.constant 0.000000e+00 : f32
    %171 = vector.broadcast %cst_72 : f32 to vector<1x1200xf32>
    %172 = arith.maximumf %169, %171 : vector<1x1200xf32>
    %173 = vector.broadcast %170 : f32 to vector<1x1200xf32>
    %174 = arith.mulf %173, %172 : vector<1x1200xf32>
    %175 = arith.addf %132, %174 : vector<1x1200xf32>
    %c0_73 = arith.constant 0 : index
    %c0_74 = arith.constant 0 : index
    %c0_75 = arith.constant 0 : index
    %176 = vector.load %arg6[%c0_73, %c0_74, %c0_75] : memref<1x1x1200xf32, #tpu.memory_space<vmem>>, vector<1x1x1200xf32>
    %177 = vector.shape_cast %176 : vector<1x1x1200xf32> to vector<1x1200xf32>
    %178 = vector.shape_cast %175 : vector<1x1200xf32> to vector<1x1x1200xf32>
    tpu.vector_store %arg6[%c0_73, %c0_74, %c0_75], %178 {strides = array<i32>} : memref<1x1x1200xf32, #tpu.memory_space<vmem>>, vector<1x1x1200xf32>,
    return
  }
  func.func @transform_0(%arg0: i32) -> (i32, i32, i32) {
    %c0_i32 = arith.constant 0 : i32
    %c0_i32_0 = arith.constant 0 : i32
    %c0_i32_1 = arith.constant 0 : i32
    return %arg0, %c0_i32, %c0_i32_0 : i32, i32, i32
  }
  func.func @transform_1(%arg0: i32) -> (i32, i32) {
    %c0_i32 = arith.constant 0 : i32
    %c0_i32_0 = arith.constant 0 : i32
    %c0_i32_1 = arith.constant 0 : i32
    return %c0_i32, %c0_i32_0 : i32, i32
  }
  func.func @transform_2(%arg0: i32) -> (i32, i32) {
    %c0_i32 = arith.constant 0 : i32
    %c0_i32_0 = arith.constant 0 : i32
    %c0_i32_1 = arith.constant 0 : i32
    return %c0_i32, %c0_i32_0 : i32, i32
  }
  func.func @transform_3(%arg0: i32) -> (i32, i32) {
    %c0_i32 = arith.constant 0 : i32
    %c0_i32_0 = arith.constant 0 : i32
    %c0_i32_1 = arith.constant 0 : i32
    return %c0_i32, %c0_i32_0 : i32, i32
  }
  func.func @transform_4(%arg0: i32) -> (i32, i32) {
    %c0_i32 = arith.constant 0 : i32
    %c0_i32_0 = arith.constant 0 : i32
    %c0_i32_1 = arith.constant 0 : i32
    return %c0_i32, %c0_i32_0 : i32, i32
  }
  func.func @transform_5(%arg0: i32) -> (i32, i32, i32) {
    %c0_i32 = arith.constant 0 : i32
    %c0_i32_0 = arith.constant 0 : i32
    %c0_i32_1 = arith.constant 0 : i32
    return %arg0, %c0_i32, %c0_i32_0 : i32, i32, i32
  }
}

</mosaic_0001>

<llo_original>
// kernel: tpu_custom_call.1
$region0: #{tpu_custom_call.1}
  #allocation0 [shape = 'u32[]', space=smem, size = 0x4, offset = 0x4, fixed_abs, tag = 'smem constant byte address 0x4 - core index']
  #allocation1 [shape = 'u32[144,128]{1,0:T(1,128)}', space=vmem, size = 0x12000, scoped, tag = 'internal scratch']
  #allocation2 [shape = 'f32[1,1]{1,0:T(1,128)S(6)}', space=smem, size = 0x200, scoped, tag = 'scoped memory for tpu_custom_call.1']
  %s0 = inlined_call_operand.vmem [shape: f32[4,7,1200], index: 0, kind: input, shape index: {}]
  %s1 = inlined_call_operand.vmem [shape: f32[4,7], index: 1, kind: input, shape index: {}]
  %s2 = inlined_call_operand.vmem [shape: f32[1,4], index: 2, kind: input, shape index: {}]
  %s3 = inlined_call_operand.vmem [shape: f32[1,4], index: 3, kind: input, shape index: {}]
  %s4 = inlined_call_operand.<no memory space> [shape: f32[1,1], index: 4, kind: input, shape index: {}]
  %s5 = inlined_call_operand.hbm [shape: f32[4,1,1200], index: 5, kind: output, shape index: {}]
  %s6 = sld [smem:[#allocation0]]
  $region65: #{tpu_custom_call.1} parent=0
    _
  %s8 = ssub.s32 1, %s6
  %s9 = scalar_select 0, %s8, %s6
  %10 = sst [smem:[#allocation2]] %s4
  $region1: #{tpu_custom_call.1} parent=0
    #allocation3 [shape = 'u8[2048]{0}', space=smem, size = 0x800, scoped, tag = 'input window, operand 1, single buffered']
    #allocation4 [shape = 's32[2]{0}', space=sflag, size = 0x8, scoped, tag = 'scoped memory for tpu_custom_call.1']
    #allocation5 [shape = 's32[2]{0}', space=sflag, size = 0x8, scoped, tag = 'scoped memory for tpu_custom_call.1']
    #allocation6 [shape = 'u8[512]{0}', space=smem, size = 0x200, scoped, tag = 'input window, operand 2, single buffered']
    #allocation7 [shape = 's32[1]{0}', space=sflag, size = 0x4, scoped, tag = 'scoped memory for tpu_custom_call.1']
    #allocation8 [shape = 'u8[512]{0}', space=smem, size = 0x200, scoped, tag = 'input window, operand 3, single buffered']
    #allocation9 [shape = 'u8[10240]{0}', space=vmem, size = 0x2800, scoped, tag = 'output window, operand 0']
    %11 = vsyncpa [#allocation5], 0
    %12 = vsyncpa [#allocation7], 0
    %13 = vsyncpa [#allocation4], 0
    %s14 = scalar_lea.sflag [#allocation4], 1
    %15 = vsyncpa %s14, 0
    loop: start=0, step=1, limit=6
    $region2: #{tpu_custom_call.1} parent=1 // loop_pre_header
      _
    $region3: #{tpu_custom_call.1} parent=1 // loop_header
      %s17 = sphi 0, %s21
      %p18 = scmp.ge.s32.totalorder %s17, 6
      %s27 = sphi 0, %s29
      %s30 = sphi 0, %s27
      %s31 = sphi 0, %s30
      %s47 = sphi 0, %s31
      %s51 = sphi 0, %s51
      %s53 = sphi 0, %s51
      %s54 = sphi 0, %s53
      %s68 = sphi 0, %s54
      %s72 = sphi 0, %s72
      %s74 = sphi 0, %s72
      %s75 = sphi 0, %s74
      %s89 = sphi 0, %s75
      %s93 = sphi 0, %s93
      %s95 = sphi 0, %s93
      %s96 = sphi 0, %s95
      %s110 = sphi 0, %s96
      %s114 = sphi 0, %s114
      %s116 = sphi 0, %s114
      %s117 = sphi 0, %s116
      %s131 = sphi 0, %s117
      %s137 = sphi 0, %s139
      %s140 = sphi 0, %s137
      %s141 = sphi 0, %s140
      %s157 = sphi 0, %s141
    $region4: #{tpu_custom_call.1} parent=1 // loop_header_branch
      %20 = sbr.rel (%p18) target = $region8
    $region5: #{tpu_custom_call.1} parent=1 // loop_body
      %s22 = ssub.s32 %s17, 1
      %s23 = ssub.s32 %s17, 2
      %s24 = sadd.s32 %s17, 1
      %s25 = ssub.s32 %s17, %s24
      %p26 = scmp.eq.s32.totalorder %s25, 0
      %s28 = sadd.s32 %s27, 1
      %s29 = scalar_select %p26, %s27, %s28
      %p32 = pneg %p26
      %p33 = scmp.eq.s32.totalorder %s17, 3
      %p34 = por %p32, %p33
      %p35 = scmp.ne.s32.totalorder %s27, %s30
      %p36 = scmp.eq.s32.totalorder %s17, 0
      %p37 = por %p35, %p36
      %p38 = scmp.ne.s32.totalorder %s27, %s30
      %p39 = scmp.eq.s32.totalorder %s22, 3
      %p40 = por %p38, %p39
      %p41 = scmp.ne.s32.totalorder %s30, %s31
      %p42 = scmp.eq.s32.totalorder %s22, 0
      %p43 = por %p41, %p42
      %p44 = scmp.ne.s32.totalorder %s30, %s31
      %p45 = scmp.eq.s32.totalorder %s23, 3
      %p46 = por %p44, %p45
      %p48 = scmp.ne.s32.totalorder %s31, %s47
      %p49 = scmp.eq.s32.totalorder %s23, 0
      %p50 = por %p48, %p49
      %s52 = sadd.s32 %s51, 1
      %p55 = scmp.eq.s32.totalorder %s17, 3
      %p56 = scmp.ne.s32.totalorder %s51, %s53
      %p57 = scmp.eq.s32.totalorder %s17, 0
      %p58 = por %p56, %p57
      %p59 = scmp.ne.s32.totalorder %s51, %s53
      %p60 = scmp.eq.s32.totalorder %s22, 3
      %p61 = por %p59, %p60
      %p62 = scmp.ne.s32.totalorder %s53, %s54
      %p63 = scmp.eq.s32.totalorder %s22, 0
      %p64 = por %p62, %p63
      %p65 = scmp.ne.s32.totalorder %s53, %s54
      %p66 = scmp.eq.s32.totalorder %s23, 3
      %p67 = por %p65, %p66
      %p69 = scmp.ne.s32.totalorder %s54, %s68
      %p70 = scmp.eq.s32.totalorder %s23, 0
      %p71 = por %p69, %p70
      %s73 = sadd.s32 %s72, 1
      %p76 = scmp.eq.s32.totalorder %s17, 3
      %p77 = scmp.ne.s32.totalorder %s72, %s74
      %p78 = scmp.eq.s32.totalorder %s17, 0
      %p79 = por %p77, %p78
      %p80 = scmp.ne.s32.totalorder %s72, %s74
      %p81 = scmp.eq.s32.totalorder %s22, 3
      %p82 = por %p80, %p81
      %p83 = scmp.ne.s32.totalorder %s74, %s75
      %p84 = scmp.eq.s32.totalorder %s22, 0
      %p85 = por %p83, %p84
      %p86 = scmp.ne.s32.totalorder %s74, %s75
      %p87 = scmp.eq.s32.totalorder %s23, 3
      %p88 = por %p86, %p87
      %p90 = scmp.ne.s32.totalorder %s75, %s89
      %p91 = scmp.eq.s32.totalorder %s23, 0
      %p92 = por %p90, %p91
      %s94 = sadd.s32 %s93, 1
      %p97 = scmp.eq.s32.totalorder %s17, 3
      %p98 = scmp.ne.s32.totalorder %s93, %s95
      %p99 = scmp.eq.s32.totalorder %s17, 0
      %p100 = por %p98, %p99
      %p101 = scmp.ne.s32.totalorder %s93, %s95
      %p102 = scmp.eq.s32.totalorder %s22, 3
      %p103 = por %p101, %p102
      %p104 = scmp.ne.s32.totalorder %s95, %s96
      %p105 = scmp.eq.s32.totalorder %s22, 0
      %p106 = por %p104, %p105
      %p107 = scmp.ne.s32.totalorder %s95, %s96
      %p108 = scmp.eq.s32.totalorder %s23, 3
      %p109 = por %p107, %p108
      %p111 = scmp.ne.s32.totalorder %s96, %s110
      %p112 = scmp.eq.s32.totalorder %s23, 0
      %p113 = por %p111, %p112
      %s115 = sadd.s32 %s114, 1
      %p118 = scmp.eq.s32.totalorder %s17, 3
      %p119 = scmp.ne.s32.totalorder %s114, %s116
      %p120 = scmp.eq.s32.totalorder %s17, 0
      %p121 = por %p119, %p120
      %p122 = scmp.ne.s32.totalorder %s114, %s116
      %p123 = scmp.eq.s32.totalorder %s22, 3
      %p124 = por %p122, %p123
      %p125 = scmp.ne.s32.totalorder %s116, %s117
      %p126 = scmp.eq.s32.totalorder %s22, 0
      %p127 = por %p125, %p126
      %p128 = scmp.ne.s32.totalorder %s116, %s117
      %p129 = scmp.eq.s32.totalorder %s23, 3
      %p130 = por %p128, %p129
      %p132 = scmp.ne.s32.totalorder %s117, %s131
      %p133 = scmp.eq.s32.totalorder %s23, 0
      %p134 = por %p132, %p133
      %s135 = ssub.s32 %s17, %s24
      %p136 = scmp.eq.s32.totalorder %s135, 0
      %s138 = sadd.s32 %s137, 1
      %s139 = scalar_select %p136, %s137, %s138
      %p142 = pneg %p136
      %p143 = scmp.eq.s32.totalorder %s17, 3
      %p144 = por %p142, %p143
      %p145 = scmp.ne.s32.totalorder %s137, %s140
      %p146 = scmp.eq.s32.totalorder %s17, 0
      %p147 = por %p145, %p146
      %p148 = scmp.ne.s32.totalorder %s137, %s140
      %p149 = scmp.eq.s32.totalorder %s22, 3
      %p150 = por %p148, %p149
      %p151 = scmp.ne.s32.totalorder %s140, %s141
      %p152 = scmp.eq.s32.totalorder %s22, 0
      %p153 = por %p151, %p152
      %p154 = scmp.ne.s32.totalorder %s140, %s141
      %p155 = scmp.eq.s32.totalorder %s23, 3
      %p156 = por %p154, %p155
      %p158 = scmp.ne.s32.totalorder %s141, %s157
      %p159 = scmp.eq.s32.totalorder %s23, 0
      %p160 = por %p158, %p159
      %p161 = scmp.le.s32.totalorder 1, %s17
      %p162 = scmp.lt.s32.totalorder %s17, 5
      %p163 = pnand %p161, %p162
      %p164 = pneg %p163
      // Predicated region
      $region9: #{tpu_custom_call.1} parent=5 // pred_check
        _
      $region10: #{tpu_custom_call.1} parent=5 // pred_check_branch
        %166 = sbr.rel (%p163) target = $region12
      $region11: #{tpu_custom_call.1} parent=5 // pred_region
        %s167 = ssub.s32 %s17, 1
        // Predicated region
        $region13: #{tpu_custom_call.1} parent=11 // pred_check
          %p168 = pneg %p64
        $region14: #{tpu_custom_call.1} parent=11 // pred_check_branch
          %170 = sbr.rel (%p168) target = $region16
        $region15: #{tpu_custom_call.1} parent=11 // pred_region
          %s172 = ssub.s32 64, 64
          %173 = vsyncadd [#allocation5], %s172
          %s175 = sshll.u32 %s1, 4
          %s176 = int_to_ptr.vmem [resolvable:$true] %s175
          %178 = dma.vmem_to_smem %s176, 64, [#allocation3], [#allocation5]
        $region16: #{tpu_custom_call.1} parent=11 // pred_fallthru
          _
        // Predicated region
        $region17: #{tpu_custom_call.1} parent=11 // pred_check
          %p179 = pneg %p85
        $region18: #{tpu_custom_call.1} parent=11 // pred_check_branch
          %181 = sbr.rel (%p179) target = $region20
        $region19: #{tpu_custom_call.1} parent=11 // pred_region
          %s183 = ssub.s32 16, 16
          %184 = vsyncadd [#allocation7], %s183
          %s186 = sshll.u32 %s2, 4
          %s187 = int_to_ptr.vmem [resolvable:$true] %s186
          %189 = dma.vmem_to_smem %s187, 16, [#allocation6], [#allocation7]
        $region20: #{tpu_custom_call.1} parent=11 // pred_fallthru
          _
        // Predicated region
        $region21: #{tpu_custom_call.1} parent=11 // pred_check
          %p190 = pneg %p106
        $region22: #{tpu_custom_call.1} parent=11 // pred_check_branch
          %192 = sbr.rel (%p190) target = $region24
        $region23: #{tpu_custom_call.1} parent=11 // pred_region
          %s194 = ssub.s32 16, 16
          %195 = vsyncadd [#allocation7], %s194
          %s197 = sshll.u32 %s3, 4
          %s198 = int_to_ptr.vmem [resolvable:$true] %s197
          %200 = dma.vmem_to_smem %s198, 16, [#allocation8], [#allocation7]
        $region24: #{tpu_custom_call.1} parent=11 // pred_fallthru
          _
        // Predicated region
        $region25: #{tpu_custom_call.1} parent=11 // pred_check
          %p201 = pneg %p127
        $region26: #{tpu_custom_call.1} parent=11 // pred_check_branch
          %203 = sbr.rel (%p201) target = $region28
        $region27: #{tpu_custom_call.1} parent=11 // pred_region
          _
        $region28: #{tpu_custom_call.1} parent=11 // pred_fallthru
          _
      $region12: #{tpu_custom_call.1} parent=5 // pred_fallthru
        _
      %p204 = scmp.lt.s32.totalorder %s17, 4
      // Predicated region
      $region29: #{tpu_custom_call.1} parent=5 // pred_check
        %p205 = pneg %p204
      $region30: #{tpu_custom_call.1} parent=5 // pred_check_branch
        %207 = sbr.rel (%p205) target = $region32
      $region31: #{tpu_custom_call.1} parent=5 // pred_region
        // Predicated region
        $region33: #{tpu_custom_call.1} parent=31 // pred_check
          %p208 = pneg %p37
        $region34: #{tpu_custom_call.1} parent=31 // pred_check_branch
          %210 = sbr.rel (%p208) target = $region36
        $region35: #{tpu_custom_call.1} parent=31 // pred_region
          %p211 = scmp.lt.s32.totalorder %s17, 3
          %s212 = scalar_select %p211, %s17, 3
          %s213 = smul.addr %s212, 10
          %s214 = smul.addr %s213, 8
          %s215 = scalar_lea.vmem %s0, %s214
        $region36: #{tpu_custom_call.1} parent=31 // pred_fallthru
          _
      $region32: #{tpu_custom_call.1} parent=5 // pred_fallthru
        _
      %p216 = scmp.le.s32.totalorder 1, %s17
      %p217 = scmp.lt.s32.totalorder %s17, 5
      %p218 = pnand %p216, %p217
      %p219 = pneg %p218
      // Predicated region
      $region37: #{tpu_custom_call.1} parent=5 // pred_check
        _
      $region38: #{tpu_custom_call.1} parent=5 // pred_check_branch
        %221 = sbr.rel (%p218) target = $region40
      $region39: #{tpu_custom_call.1} parent=5 // pred_region
        %s222 = ssub.s32 %s17, 1
        // Predicated region
        $region41: #{tpu_custom_call.1} parent=39 // pred_check
          %p223 = pneg %p64
        $region42: #{tpu_custom_call.1} parent=39 // pred_check_branch
          %225 = sbr.rel (%p223) target = $region44
        $region43: #{tpu_custom_call.1} parent=39 // pred_region
          %226 = dma.done [#allocation5], 64
        $region44: #{tpu_custom_call.1} parent=39 // pred_fallthru
          _
        // Predicated region
        $region45: #{tpu_custom_call.1} parent=39 // pred_check
          %p227 = pneg %p85
        $region46: #{tpu_custom_call.1} parent=39 // pred_check_branch
          %229 = sbr.rel (%p227) target = $region48
        $region47: #{tpu_custom_call.1} parent=39 // pred_region
          %230 = dma.done [#allocation7], 16
        $region48: #{tpu_custom_call.1} parent=39 // pred_fallthru
          _
        // Predicated region
        $region49: #{tpu_custom_call.1} parent=39 // pred_check
          %p231 = pneg %p106
        $region50: #{tpu_custom_call.1} parent=39 // pred_check_branch
          %233 = sbr.rel (%p231) target = $region52
        $region51: #{tpu_custom_call.1} parent=39 // pred_region
          %234 = dma.done [#allocation7], 16
        $region52: #{tpu_custom_call.1} parent=39 // pred_fallthru
          _
        %235 = sfence
        %p236 = scmp.lt.s32.totalorder %s22, 3
        %s237 = scalar_select %p236, %s22, 3
        %s238 = smul.addr %s237, 10
        %s239 = smul.addr %s238, 8
        %s240 = scalar_lea.vmem %s0, %s239
        %p241 = pneg %p43
        %p242 = pneg %p40
        %p243 = pneg %p64
        %p244 = pneg %p61
        %p245 = pneg %p85
        %p246 = pneg %p82
        %p247 = pneg %p106
        %p248 = pneg %p103
        %p249 = pneg %p127
        %p250 = pneg %p124
        %p251 = pneg %p153
        %p252 = pneg %p150
        %s253 = sand.u32 %s140, 1
        %s254 = scalar_lea.sflag [#allocation4], %s253
        %s255 = sand.u32 %s140, 1
        %s256 = smul.addr %s255, 10
        %s257 = scalar_lea.vmem [#allocation9], %s256
        %p258 = scmp.lt.s32.totalorder %s22, 3
        %s259 = scalar_select %p258, %s22, 3
        %s260 = smul.addr %s259, 10
        %s261 = smul.addr %s260, 8
        %s262 = scalar_lea.vmem %s0, %s261
        %v263 = vld [vmem:[%s262] sm:$0x7f]
        %v264 = vld [vmem:[%s262 + $0x8] sm:$0x7f]
        %v265 = vld [vmem:[%s262 + $0x10] sm:$0x7f]
        %v266 = vld [vmem:[%s262 + $0x18] sm:$0x7f]
        %v267 = vld [vmem:[%s262 + $0x20] sm:$0x7f]
        %v268 = vld [vmem:[%s262 + $0x28] sm:$0x7f]
        %v269 = vld [vmem:[%s262 + $0x30] sm:$0x7f]
        %v270 = vld [vmem:[%s262 + $0x38] sm:$0x7f]
        %v271 = vld [vmem:[%s262 + $0x40] sm:$0x7f]
        %v272 = vld [vmem:[%s262 + $0x48] sm:$0x7f]
        %s273 = sld [smem:[#allocation2]]
        %v274 = vstv %s273
        %s275 = sld [smem:[#allocation6]]
        %v276 = vstv %s275
        %s277 = sld [smem:[#allocation3]]
        %v278 = vstv %s277
        %v279 = vmul.f32 %v278, %v263
        %v280 = vmul.f32 %v278, %v264
        %v281 = vmul.f32 %v278, %v265
        %v282 = vmul.f32 %v278, %v266
        %v283 = vmul.f32 %v278, %v267
        %v284 = vmul.f32 %v278, %v268
        %v285 = vmul.f32 %v278, %v269
        %v286 = vmul.f32 %v278, %v270
        %v287 = vmul.f32 %v278, %v271
        %v288 = vmul.f32 %v278, %v272
        %v289 = vadd.f32 %v276, %v279
        %v290 = vadd.f32 %v276, %v280
        %v291 = vadd.f32 %v276, %v281
        %v292 = vadd.f32 %v276, %v282
        %v293 = vadd.f32 %v276, %v283
        %v294 = vadd.f32 %v276, %v284
        %v295 = vadd.f32 %v276, %v285
        %v296 = vadd.f32 %v276, %v286
        %v297 = vadd.f32 %v276, %v287
        %v298 = vadd.f32 %v276, %v288
        %s299 = sld [smem:[#allocation3 + $0x1]]
        %v300 = vstv %s299
        %v301 = vmul.f32 %v300, %v263
        %v302 = vmul.f32 %v300, %v264
        %v303 = vmul.f32 %v300, %v265
        %v304 = vmul.f32 %v300, %v266
        %v305 = vmul.f32 %v300, %v267
        %v306 = vmul.f32 %v300, %v268
        %v307 = vmul.f32 %v300, %v269
        %v308 = vmul.f32 %v300, %v270
        %v309 = vmul.f32 %v300, %v271
        %v310 = vmul.f32 %v300, %v272
        %v321 = vrot.slane %v301, 1
        %v322 = vrot.slane %v302, 1
        %v323 = vrot.slane %v303, 1
        %v324 = vrot.slane %v304, 1
        %v325 = vrot.slane %v305, 1
        %v326 = vrot.slane %v306, 1
        %v327 = vrot.slane %v307, 1
        %v328 = vrot.slane %v308, 1
        %v329 = vrot.slane %v309, 1
        %v330 = vrot.slane %v310, 1
        %v341 = vadd.f32 %v289, %v321
        %v342 = vadd.f32 %v290, %v322
        %v343 = vadd.f32 %v291, %v323
        %v344 = vadd.f32 %v292, %v324
        %v345 = vadd.f32 %v293, %v325
        %v346 = vadd.f32 %v294, %v326
        %v347 = vadd.f32 %v295, %v327
        %v348 = vadd.f32 %v296, %v328
        %v349 = vadd.f32 %v297, %v329
        %v350 = vadd.f32 %v298, %v330
        %s351 = sld [smem:[#allocation3 + $0x2]]
        %v352 = vstv %s351
        %v353 = vmul.f32 %v352, %v263
        %v354 = vmul.f32 %v352, %v264
        %v355 = vmul.f32 %v352, %v265
        %v356 = vmul.f32 %v352, %v266
        %v357 = vmul.f32 %v352, %v267
        %v358 = vmul.f32 %v352, %v268
        %v359 = vmul.f32 %v352, %v269
        %v360 = vmul.f32 %v352, %v270
        %v361 = vmul.f32 %v352, %v271
        %v362 = vmul.f32 %v352, %v272
        %v373 = vrot.slane %v353, 2
        %v374 = vrot.slane %v354, 2
        %v375 = vrot.slane %v355, 2
        %v376 = vrot.slane %v356, 2
        %v377 = vrot.slane %v357, 2
        %v378 = vrot.slane %v358, 2
        %v379 = vrot.slane %v359, 2
        %v380 = vrot.slane %v360, 2
        %v381 = vrot.slane %v361, 2
        %v382 = vrot.slane %v362, 2
        %v393 = vadd.f32 %v341, %v373
        %v394 = vadd.f32 %v342, %v374
        %v395 = vadd.f32 %v343, %v375
        %v396 = vadd.f32 %v344, %v376
        %v397 = vadd.f32 %v345, %v377
        %v398 = vadd.f32 %v346, %v378
        %v399 = vadd.f32 %v347, %v379
        %v400 = vadd.f32 %v348, %v380
        %v401 = vadd.f32 %v349, %v381
        %v402 = vadd.f32 %v350, %v382
        %s403 = sld [smem:[#allocation3 + $0x3]]
        %v404 = vstv %s403
        %v405 = vmul.f32 %v404, %v263
        %v406 = vmul.f32 %v404, %v264
        %v407 = vmul.f32 %v404, %v265
        %v408 = vmul.f32 %v404, %v266
        %v409 = vmul.f32 %v404, %v267
        %v410 = vmul.f32 %v404, %v268
        %v411 = vmul.f32 %v404, %v269
        %v412 = vmul.f32 %v404, %v270
        %v413 = vmul.f32 %v404, %v271
        %v414 = vmul.f32 %v404, %v272
        %v425 = vrot.slane %v405, 3
        %v426 = vrot.slane %v406, 3
        %v427 = vrot.slane %v407, 3
        %v428 = vrot.slane %v408, 3
        %v429 = vrot.slane %v409, 3
        %v430 = vrot.slane %v410, 3
        %v431 = vrot.slane %v411, 3
        %v432 = vrot.slane %v412, 3
        %v433 = vrot.slane %v413, 3
        %v434 = vrot.slane %v414, 3
        %v445 = vadd.f32 %v393, %v425
        %v446 = vadd.f32 %v394, %v426
        %v447 = vadd.f32 %v395, %v427
        %v448 = vadd.f32 %v396, %v428
        %v449 = vadd.f32 %v397, %v429
        %v450 = vadd.f32 %v398, %v430
        %v451 = vadd.f32 %v399, %v431
        %v452 = vadd.f32 %v400, %v432
        %v453 = vadd.f32 %v401, %v433
        %v454 = vadd.f32 %v402, %v434
        %s455 = sld [smem:[#allocation3 + $0x4]]
        %v456 = vstv %s455
        %v457 = vmul.f32 %v456, %v263
        %v458 = vmul.f32 %v456, %v264
        %v459 = vmul.f32 %v456, %v265
        %v460 = vmul.f32 %v456, %v266
        %v461 = vmul.f32 %v456, %v267
        %v462 = vmul.f32 %v456, %v268
        %v463 = vmul.f32 %v456, %v269
        %v464 = vmul.f32 %v456, %v270
        %v465 = vmul.f32 %v456, %v271
        %v466 = vmul.f32 %v456, %v272
        %v477 = vrot.slane %v457, 4
        %v478 = vrot.slane %v458, 4
        %v479 = vrot.slane %v459, 4
        %v480 = vrot.slane %v460, 4
        %v481 = vrot.slane %v461, 4
        %v482 = vrot.slane %v462, 4
        %v483 = vrot.slane %v463, 4
        %v484 = vrot.slane %v464, 4
        %v485 = vrot.slane %v465, 4
        %v486 = vrot.slane %v466, 4
        %v497 = vadd.f32 %v445, %v477
        %v498 = vadd.f32 %v446, %v478
        %v499 = vadd.f32 %v447, %v479
        %v500 = vadd.f32 %v448, %v480
        %v501 = vadd.f32 %v449, %v481
        %v502 = vadd.f32 %v450, %v482
        %v503 = vadd.f32 %v451, %v483
        %v504 = vadd.f32 %v452, %v484
        %v505 = vadd.f32 %v453, %v485
        %v506 = vadd.f32 %v454, %v486
        %s507 = sld [smem:[#allocation3 + $0x5]]
        %v508 = vstv %s507
        %v509 = vmul.f32 %v508, %v263
        %v510 = vmul.f32 %v508, %v264
        %v511 = vmul.f32 %v508, %v265
        %v512 = vmul.f32 %v508, %v266
        %v513 = vmul.f32 %v508, %v267
        %v514 = vmul.f32 %v508, %v268
        %v515 = vmul.f32 %v508, %v269
        %v516 = vmul.f32 %v508, %v270
        %v517 = vmul.f32 %v508, %v271
        %v518 = vmul.f32 %v508, %v272
        %v529 = vrot.slane %v509, 5
        %v530 = vrot.slane %v510, 5
        %v531 = vrot.slane %v511, 5
        %v532 = vrot.slane %v512, 5
        %v533 = vrot.slane %v513, 5
        %v534 = vrot.slane %v514, 5
        %v535 = vrot.slane %v515, 5
        %v536 = vrot.slane %v516, 5
        %v537 = vrot.slane %v517, 5
        %v538 = vrot.slane %v518, 5
        %v549 = vadd.f32 %v497, %v529
        %v550 = vadd.f32 %v498, %v530
        %v551 = vadd.f32 %v499, %v531
        %v552 = vadd.f32 %v500, %v532
        %v553 = vadd.f32 %v501, %v533
        %v554 = vadd.f32 %v502, %v534
        %v555 = vadd.f32 %v503, %v535
        %v556 = vadd.f32 %v504, %v536
        %v557 = vadd.f32 %v505, %v537
        %v558 = vadd.f32 %v506, %v538
        %s559 = sld [smem:[#allocation3 + $0x6]]
        %v560 = vstv %s559
        %v561 = vmul.f32 %v560, %v263
        %v562 = vmul.f32 %v560, %v264
        %v563 = vmul.f32 %v560, %v265
        %v564 = vmul.f32 %v560, %v266
        %v565 = vmul.f32 %v560, %v267
        %v566 = vmul.f32 %v560, %v268
        %v567 = vmul.f32 %v560, %v269
        %v568 = vmul.f32 %v560, %v270
        %v569 = vmul.f32 %v560, %v271
        %v570 = vmul.f32 %v560, %v272
        %v581 = vrot.slane %v561, 6
        %v582 = vrot.slane %v562, 6
        %v583 = vrot.slane %v563, 6
        %v584 = vrot.slane %v564, 6
        %v585 = vrot.slane %v565, 6
        %v586 = vrot.slane %v566, 6
        %v587 = vrot.slane %v567, 6
        %v588 = vrot.slane %v568, 6
        %v589 = vrot.slane %v569, 6
        %v590 = vrot.slane %v570, 6
        %v601 = vadd.f32 %v549, %v581
        %v602 = vadd.f32 %v550, %v582
        %v603 = vadd.f32 %v551, %v583
        %v604 = vadd.f32 %v552, %v584
        %v605 = vadd.f32 %v553, %v585
        %v606 = vadd.f32 %v554, %v586
        %v607 = vadd.f32 %v555, %v587
        %v608 = vadd.f32 %v556, %v588
        %v609 = vadd.f32 %v557, %v589
        %v610 = vadd.f32 %v558, %v590
        %s611 = sld [smem:[#allocation8]]
        %v612 = vmax.f32 %v601, 0.0
        %v613 = vmax.f32 %v602, 0.0
        %v614 = vmax.f32 %v603, 0.0
        %v615 = vmax.f32 %v604, 0.0
        %v616 = vmax.f32 %v605, 0.0
        %v617 = vmax.f32 %v606, 0.0
        %v618 = vmax.f32 %v607, 0.0
        %v619 = vmax.f32 %v608, 0.0
        %v620 = vmax.f32 %v609, 0.0
        %v621 = vmax.f32 %v610, 0.0
        %v622 = vstv %s611
        %v623 = vmul.f32 %v622, %v612
        %v624 = vmul.f32 %v622, %v613
        %v625 = vmul.f32 %v622, %v614
        %v626 = vmul.f32 %v622, %v615
        %v627 = vmul.f32 %v622, %v616
        %v628 = vmul.f32 %v622, %v617
        %v629 = vmul.f32 %v622, %v618
        %v630 = vmul.f32 %v622, %v619
        %v631 = vmul.f32 %v622, %v620
        %v632 = vmul.f32 %v622, %v621
        %v633 = vadd.f32 %v274, %v623
        %v634 = vadd.f32 %v274, %v624
        %v635 = vadd.f32 %v274, %v625
        %v636 = vadd.f32 %v274, %v626
        %v637 = vadd.f32 %v274, %v627
        %v638 = vadd.f32 %v274, %v628
        %v639 = vadd.f32 %v274, %v629
        %v640 = vadd.f32 %v274, %v630
        %v641 = vadd.f32 %v274, %v631
        %v642 = vadd.f32 %v274, %v632
        %s643 = sld [smem:[#allocation6 + $0x1]]
        %v644 = vstv %s643
        %s645 = sld [smem:[#allocation3 + $0x80]]
        %v646 = vstv %s645
        %v647 = vmul.f32 %v646, %v263
        %v648 = vmul.f32 %v646, %v264
        %v649 = vmul.f32 %v646, %v265
        %v650 = vmul.f32 %v646, %v266
        %v651 = vmul.f32 %v646, %v267
        %v652 = vmul.f32 %v646, %v268
        %v653 = vmul.f32 %v646, %v269
        %v654 = vmul.f32 %v646, %v270
        %v655 = vmul.f32 %v646, %v271
        %v656 = vmul.f32 %v646, %v272
        %v657 = vadd.f32 %v644, %v647
        %v658 = vadd.f32 %v644, %v648
        %v659 = vadd.f32 %v644, %v649
        %v660 = vadd.f32 %v644, %v650
        %v661 = vadd.f32 %v644, %v651
        %v662 = vadd.f32 %v644, %v652
        %v663 = vadd.f32 %v644, %v653
        %v664 = vadd.f32 %v644, %v654
        %v665 = vadd.f32 %v644, %v655
        %v666 = vadd.f32 %v644, %v656
        %s667 = sld [smem:[#allocation3 + $0x81]]
        %v668 = vstv %s667
        %v669 = vmul.f32 %v668, %v263
        %v670 = vmul.f32 %v668, %v264
        %v671 = vmul.f32 %v668, %v265
        %v672 = vmul.f32 %v668, %v266
        %v673 = vmul.f32 %v668, %v267
        %v674 = vmul.f32 %v668, %v268
        %v675 = vmul.f32 %v668, %v269
        %v676 = vmul.f32 %v668, %v270
        %v677 = vmul.f32 %v668, %v271
        %v678 = vmul.f32 %v668, %v272
        %v689 = vrot.slane %v669, 1
        %v690 = vrot.slane %v670, 1
        %v691 = vrot.slane %v671, 1
        %v692 = vrot.slane %v672, 1
        %v693 = vrot.slane %v673, 1
        %v694 = vrot.slane %v674, 1
        %v695 = vrot.slane %v675, 1
        %v696 = vrot.slane %v676, 1
        %v697 = vrot.slane %v677, 1
        %v698 = vrot.slane %v678, 1
        %v709 = vadd.f32 %v657, %v689
        %v710 = vadd.f32 %v658, %v690
        %v711 = vadd.f32 %v659, %v691
        %v712 = vadd.f32 %v660, %v692
        %v713 = vadd.f32 %v661, %v693
        %v714 = vadd.f32 %v662, %v694
        %v715 = vadd.f32 %v663, %v695
        %v716 = vadd.f32 %v664, %v696
        %v717 = vadd.f32 %v665, %v697
        %v718 = vadd.f32 %v666, %v698
        %s719 = sld [smem:[#allocation3 + $0x82]]
        %v720 = vstv %s719
        %v721 = vmul.f32 %v720, %v263
        %v722 = vmul.f32 %v720, %v264
        %v723 = vmul.f32 %v720, %v265
        %v724 = vmul.f32 %v720, %v266
        %v725 = vmul.f32 %v720, %v267
        %v726 = vmul.f32 %v720, %v268
        %v727 = vmul.f32 %v720, %v269
        %v728 = vmul.f32 %v720, %v270
        %v729 = vmul.f32 %v720, %v271
        %v730 = vmul.f32 %v720, %v272
        %v741 = vrot.slane %v721, 2
        %v742 = vrot.slane %v722, 2
        %v743 = vrot.slane %v723, 2
        %v744 = vrot.slane %v724, 2
        %v745 = vrot.slane %v725, 2
        %v746 = vrot.slane %v726, 2
        %v747 = vrot.slane %v727, 2
        %v748 = vrot.slane %v728, 2
        %v749 = vrot.slane %v729, 2
        %v750 = vrot.slane %v730, 2
        %v761 = vadd.f32 %v709, %v741
        %v762 = vadd.f32 %v710, %v742
        %v763 = vadd.f32 %v711, %v743
        %v764 = vadd.f32 %v712, %v744
        %v765 = vadd.f32 %v713, %v745
        %v766 = vadd.f32 %v714, %v746
        %v767 = vadd.f32 %v715, %v747
        %v768 = vadd.f32 %v716, %v748
        %v769 = vadd.f32 %v717, %v749
        %v770 = vadd.f32 %v718, %v750
        %s771 = sld [smem:[#allocation3 + $0x83]]
        %v772 = vstv %s771
        %v773 = vmul.f32 %v772, %v263
        %v774 = vmul.f32 %v772, %v264
        %v775 = vmul.f32 %v772, %v265
        %v776 = vmul.f32 %v772, %v266
        %v777 = vmul.f32 %v772, %v267
        %v778 = vmul.f32 %v772, %v268
        %v779 = vmul.f32 %v772, %v269
        %v780 = vmul.f32 %v772, %v270
        %v781 = vmul.f32 %v772, %v271
        %v782 = vmul.f32 %v772, %v272
        %v793 = vrot.slane %v773, 3
        %v794 = vrot.slane %v774, 3
        %v795 = vrot.slane %v775, 3
        %v796 = vrot.slane %v776, 3
        %v797 = vrot.slane %v777, 3
        %v798 = vrot.slane %v778, 3
        %v799 = vrot.slane %v779, 3
        %v800 = vrot.slane %v780, 3
        %v801 = vrot.slane %v781, 3
        %v802 = vrot.slane %v782, 3
        %v813 = vadd.f32 %v761, %v793
        %v814 = vadd.f32 %v762, %v794
        %v815 = vadd.f32 %v763, %v795
        %v816 = vadd.f32 %v764, %v796
        %v817 = vadd.f32 %v765, %v797
        %v818 = vadd.f32 %v766, %v798
        %v819 = vadd.f32 %v767, %v799
        %v820 = vadd.f32 %v768, %v800
        %v821 = vadd.f32 %v769, %v801
        %v822 = vadd.f32 %v770, %v802
        %s823 = sld [smem:[#allocation3 + $0x84]]
        %v824 = vstv %s823
        %v825 = vmul.f32 %v824, %v263
        %v826 = vmul.f32 %v824, %v264
        %v827 = vmul.f32 %v824, %v265
        %v828 = vmul.f32 %v824, %v266
        %v829 = vmul.f32 %v824, %v267
        %v830 = vmul.f32 %v824, %v268
        %v831 = vmul.f32 %v824, %v269
        %v832 = vmul.f32 %v824, %v270
        %v833 = vmul.f32 %v824, %v271
        %v834 = vmul.f32 %v824, %v272
        %v845 = vrot.slane %v825, 4
        %v846 = vrot.slane %v826, 4
        %v847 = vrot.slane %v827, 4
        %v848 = vrot.slane %v828, 4
        %v849 = vrot.slane %v829, 4
        %v850 = vrot.slane %v830, 4
        %v851 = vrot.slane %v831, 4
        %v852 = vrot.slane %v832, 4
        %v853 = vrot.slane %v833, 4
        %v854 = vrot.slane %v834, 4
        %v865 = vadd.f32 %v813, %v845
        %v866 = vadd.f32 %v814, %v846
        %v867 = vadd.f32 %v815, %v847
        %v868 = vadd.f32 %v816, %v848
        %v869 = vadd.f32 %v817, %v849
        %v870 = vadd.f32 %v818, %v850
        %v871 = vadd.f32 %v819, %v851
        %v872 = vadd.f32 %v820, %v852
        %v873 = vadd.f32 %v821, %v853
        %v874 = vadd.f32 %v822, %v854
        %s875 = sld [smem:[#allocation3 + $0x85]]
        %v876 = vstv %s875
        %v877 = vmul.f32 %v876, %v263
        %v878 = vmul.f32 %v876, %v264
        %v879 = vmul.f32 %v876, %v265
        %v880 = vmul.f32 %v876, %v266
        %v881 = vmul.f32 %v876, %v267
        %v882 = vmul.f32 %v876, %v268
        %v883 = vmul.f32 %v876, %v269
        %v884 = vmul.f32 %v876, %v270
        %v885 = vmul.f32 %v876, %v271
        %v886 = vmul.f32 %v876, %v272
        %v897 = vrot.slane %v877, 5
        %v898 = vrot.slane %v878, 5
        %v899 = vrot.slane %v879, 5
        %v900 = vrot.slane %v880, 5
        %v901 = vrot.slane %v881, 5
        %v902 = vrot.slane %v882, 5
        %v903 = vrot.slane %v883, 5
        %v904 = vrot.slane %v884, 5
        %v905 = vrot.slane %v885, 5
        %v906 = vrot.slane %v886, 5
        %v917 = vadd.f32 %v865, %v897
        %v918 = vadd.f32 %v866, %v898
        %v919 = vadd.f32 %v867, %v899
        %v920 = vadd.f32 %v868, %v900
        %v921 = vadd.f32 %v869, %v901
        %v922 = vadd.f32 %v870, %v902
        %v923 = vadd.f32 %v871, %v903
        %v924 = vadd.f32 %v872, %v904
        %v925 = vadd.f32 %v873, %v905
        %v926 = vadd.f32 %v874, %v906
        %s927 = sld [smem:[#allocation3 + $0x86]]
        %v928 = vstv %s927
        %v929 = vmul.f32 %v928, %v263
        %v930 = vmul.f32 %v928, %v264
        %v931 = vmul.f32 %v928, %v265
        %v932 = vmul.f32 %v928, %v266
        %v933 = vmul.f32 %v928, %v267
        %v934 = vmul.f32 %v928, %v268
        %v935 = vmul.f32 %v928, %v269
        %v936 = vmul.f32 %v928, %v270
        %v937 = vmul.f32 %v928, %v271
        %v938 = vmul.f32 %v928, %v272
        %v949 = vrot.slane %v929, 6
        %v950 = vrot.slane %v930, 6
        %v951 = vrot.slane %v931, 6
        %v952 = vrot.slane %v932, 6
        %v953 = vrot.slane %v933, 6
        %v954 = vrot.slane %v934, 6
        %v955 = vrot.slane %v935, 6
        %v956 = vrot.slane %v936, 6
        %v957 = vrot.slane %v937, 6
        %v958 = vrot.slane %v938, 6
        %v969 = vadd.f32 %v917, %v949
        %v970 = vadd.f32 %v918, %v950
        %v971 = vadd.f32 %v919, %v951
        %v972 = vadd.f32 %v920, %v952
        %v973 = vadd.f32 %v921, %v953
        %v974 = vadd.f32 %v922, %v954
        %v975 = vadd.f32 %v923, %v955
        %v976 = vadd.f32 %v924, %v956
        %v977 = vadd.f32 %v925, %v957
        %v978 = vadd.f32 %v926, %v958
        %s979 = sld [smem:[#allocation8 + $0x1]]
        %v980 = vmax.f32 %v969, 0.0
        %v981 = vmax.f32 %v970, 0.0
        %v982 = vmax.f32 %v971, 0.0
        %v983 = vmax.f32 %v972, 0.0
        %v984 = vmax.f32 %v973, 0.0
        %v985 = vmax.f32 %v974, 0.0
        %v986 = vmax.f32 %v975, 0.0
        %v987 = vmax.f32 %v976, 0.0
        %v988 = vmax.f32 %v977, 0.0
        %v989 = vmax.f32 %v978, 0.0
        %v990 = vstv %s979
        %v991 = vmul.f32 %v990, %v980
        %v992 = vmul.f32 %v990, %v981
        %v993 = vmul.f32 %v990, %v982
        %v994 = vmul.f32 %v990, %v983
        %v995 = vmul.f32 %v990, %v984
        %v996 = vmul.f32 %v990, %v985
        %v997 = vmul.f32 %v990, %v986
        %v998 = vmul.f32 %v990, %v987
        %v999 = vmul.f32 %v990, %v988
        %v1000 = vmul.f32 %v990, %v989
        %v1001 = vadd.f32 %v633, %v991
        %v1002 = vadd.f32 %v634, %v992
        %v1003 = vadd.f32 %v635, %v993
        %v1004 = vadd.f32 %v636, %v994
        %v1005 = vadd.f32 %v637, %v995
        %v1006 = vadd.f32 %v638, %v996
        %v1007 = vadd.f32 %v639, %v997
        %v1008 = vadd.f32 %v640, %v998
        %v1009 = vadd.f32 %v641, %v999
        %v1010 = vadd.f32 %v642, %v1000
        %s1011 = sld [smem:[#allocation6 + $0x2]]
        %v1012 = vstv %s1011
        %s1013 = sld [smem:[#allocation3 + $0x100]]
        %v1014 = vstv %s1013
        %v1015 = vmul.f32 %v1014, %v263
        %v1016 = vmul.f32 %v1014, %v264
        %v1017 = vmul.f32 %v1014, %v265
        %v1018 = vmul.f32 %v1014, %v266
        %v1019 = vmul.f32 %v1014, %v267
        %v1020 = vmul.f32 %v1014, %v268
        %v1021 = vmul.f32 %v1014, %v269
        %v1022 = vmul.f32 %v1014, %v270
        %v1023 = vmul.f32 %v1014, %v271
        %v1024 = vmul.f32 %v1014, %v272
        %v1025 = vadd.f32 %v1012, %v1015
        %v1026 = vadd.f32 %v1012, %v1016
        %v1027 = vadd.f32 %v1012, %v1017
        %v1028 = vadd.f32 %v1012, %v1018
        %v1029 = vadd.f32 %v1012, %v1019
        %v1030 = vadd.f32 %v1012, %v1020
        %v1031 = vadd.f32 %v1012, %v1021
        %v1032 = vadd.f32 %v1012, %v1022
        %v1033 = vadd.f32 %v1012, %v1023
        %v1034 = vadd.f32 %v1012, %v1024
        %s1035 = sld [smem:[#allocation3 + $0x101]]
        %v1036 = vstv %s1035
        %v1037 = vmul.f32 %v1036, %v263
        %v1038 = vmul.f32 %v1036, %v264
        %v1039 = vmul.f32 %v1036, %v265
        %v1040 = vmul.f32 %v1036, %v266
        %v1041 = vmul.f32 %v1036, %v267
        %v1042 = vmul.f32 %v1036, %v268
        %v1043 = vmul.f32 %v1036, %v269
        %v1044 = vmul.f32 %v1036, %v270
        %v1045 = vmul.f32 %v1036, %v271
        %v1046 = vmul.f32 %v1036, %v272
        %v1057 = vrot.slane %v1037, 1
        %v1058 = vrot.slane %v1038, 1
        %v1059 = vrot.slane %v1039, 1
        %v1060 = vrot.slane %v1040, 1
        %v1061 = vrot.slane %v1041, 1
        %v1062 = vrot.slane %v1042, 1
        %v1063 = vrot.slane %v1043, 1
        %v1064 = vrot.slane %v1044, 1
        %v1065 = vrot.slane %v1045, 1
        %v1066 = vrot.slane %v1046, 1
        %v1077 = vadd.f32 %v1025, %v1057
        %v1078 = vadd.f32 %v1026, %v1058
        %v1079 = vadd.f32 %v1027, %v1059
        %v1080 = vadd.f32 %v1028, %v1060
        %v1081 = vadd.f32 %v1029, %v1061
        %v1082 = vadd.f32 %v1030, %v1062
        %v1083 = vadd.f32 %v1031, %v1063
        %v1084 = vadd.f32 %v1032, %v1064
        %v1085 = vadd.f32 %v1033, %v1065
        %v1086 = vadd.f32 %v1034, %v1066
        %s1087 = sld [smem:[#allocation3 + $0x102]]
        %v1088 = vstv %s1087
        %v1089 = vmul.f32 %v1088, %v263
        %v1090 = vmul.f32 %v1088, %v264
        %v1091 = vmul.f32 %v1088, %v265
        %v1092 = vmul.f32 %v1088, %v266
        %v1093 = vmul.f32 %v1088, %v267
        %v1094 = vmul.f32 %v1088, %v268
        %v1095 = vmul.f32 %v1088, %v269
        %v1096 = vmul.f32 %v1088, %v270
        %v1097 = vmul.f32 %v1088, %v271
        %v1098 = vmul.f32 %v1088, %v272
        %v1109 = vrot.slane %v1089, 2
        %v1110 = vrot.slane %v1090, 2
        %v1111 = vrot.slane %v1091, 2
        %v1112 = vrot.slane %v1092, 2
        %v1113 = vrot.slane %v1093, 2
        %v1114 = vrot.slane %v1094, 2
        %v1115 = vrot.slane %v1095, 2
        %v1116 = vrot.slane %v1096, 2
        %v1117 = vrot.slane %v1097, 2
        %v1118 = vrot.slane %v1098, 2
        %v1129 = vadd.f32 %v1077, %v1109
        %v1130 = vadd.f32 %v1078, %v1110
        %v1131 = vadd.f32 %v1079, %v1111
        %v1132 = vadd.f32 %v1080, %v1112
        %v1133 = vadd.f32 %v1081, %v1113
        %v1134 = vadd.f32 %v1082, %v1114
        %v1135 = vadd.f32 %v1083, %v1115
        %v1136 = vadd.f32 %v1084, %v1116
        %v1137 = vadd.f32 %v1085, %v1117
        %v1138 = vadd.f32 %v1086, %v1118
        %s1139 = sld [smem:[#allocation3 + $0x103]]
        %v1140 = vstv %s1139
        %v1141 = vmul.f32 %v1140, %v263
        %v1142 = vmul.f32 %v1140, %v264
        %v1143 = vmul.f32 %v1140, %v265
        %v1144 = vmul.f32 %v1140, %v266
        %v1145 = vmul.f32 %v1140, %v267
        %v1146 = vmul.f32 %v1140, %v268
        %v1147 = vmul.f32 %v1140, %v269
        %v1148 = vmul.f32 %v1140, %v270
        %v1149 = vmul.f32 %v1140, %v271
        %v1150 = vmul.f32 %v1140, %v272
        %v1161 = vrot.slane %v1141, 3
        %v1162 = vrot.slane %v1142, 3
        %v1163 = vrot.slane %v1143, 3
        %v1164 = vrot.slane %v1144, 3
        %v1165 = vrot.slane %v1145, 3
        %v1166 = vrot.slane %v1146, 3
        %v1167 = vrot.slane %v1147, 3
        %v1168 = vrot.slane %v1148, 3
        %v1169 = vrot.slane %v1149, 3
        %v1170 = vrot.slane %v1150, 3
        %v1181 = vadd.f32 %v1129, %v1161
        %v1182 = vadd.f32 %v1130, %v1162
        %v1183 = vadd.f32 %v1131, %v1163
        %v1184 = vadd.f32 %v1132, %v1164
        %v1185 = vadd.f32 %v1133, %v1165
        %v1186 = vadd.f32 %v1134, %v1166
        %v1187 = vadd.f32 %v1135, %v1167
        %v1188 = vadd.f32 %v1136, %v1168
        %v1189 = vadd.f32 %v1137, %v1169
        %v1190 = vadd.f32 %v1138, %v1170
        %s1191 = sld [smem:[#allocation3 + $0x104]]
        %v1192 = vstv %s1191
        %v1193 = vmul.f32 %v1192, %v263
        %v1194 = vmul.f32 %v1192, %v264
        %v1195 = vmul.f32 %v1192, %v265
        %v1196 = vmul.f32 %v1192, %v266
        %v1197 = vmul.f32 %v1192, %v267
        %v1198 = vmul.f32 %v1192, %v268
        %v1199 = vmul.f32 %v1192, %v269
        %v1200 = vmul.f32 %v1192, %v270
        %v1201 = vmul.f32 %v1192, %v271
        %v1202 = vmul.f32 %v1192, %v272
        %v1213 = vrot.slane %v1193, 4
        %v1214 = vrot.slane %v1194, 4
        %v1215 = vrot.slane %v1195, 4
        %v1216 = vrot.slane %v1196, 4
        %v1217 = vrot.slane %v1197, 4
        %v1218 = vrot.slane %v1198, 4
        %v1219 = vrot.slane %v1199, 4
        %v1220 = vrot.slane %v1200, 4
        %v1221 = vrot.slane %v1201, 4
        %v1222 = vrot.slane %v1202, 4
        %v1233 = vadd.f32 %v1181, %v1213
        %v1234 = vadd.f32 %v1182, %v1214
        %v1235 = vadd.f32 %v1183, %v1215
        %v1236 = vadd.f32 %v1184, %v1216
        %v1237 = vadd.f32 %v1185, %v1217
        %v1238 = vadd.f32 %v1186, %v1218
        %v1239 = vadd.f32 %v1187, %v1219
        %v1240 = vadd.f32 %v1188, %v1220
        %v1241 = vadd.f32 %v1189, %v1221
        %v1242 = vadd.f32 %v1190, %v1222
        %s1243 = sld [smem:[#allocation3 + $0x105]]
        %v1244 = vstv %s1243
        %v1245 = vmul.f32 %v1244, %v263
        %v1246 = vmul.f32 %v1244, %v264
        %v1247 = vmul.f32 %v1244, %v265
        %v1248 = vmul.f32 %v1244, %v266
        %v1249 = vmul.f32 %v1244, %v267
        %v1250 = vmul.f32 %v1244, %v268
        %v1251 = vmul.f32 %v1244, %v269
        %v1252 = vmul.f32 %v1244, %v270
        %v1253 = vmul.f32 %v1244, %v271
        %v1254 = vmul.f32 %v1244, %v272
        %v1265 = vrot.slane %v1245, 5
        %v1266 = vrot.slane %v1246, 5
        %v1267 = vrot.slane %v1247, 5
        %v1268 = vrot.slane %v1248, 5
        %v1269 = vrot.slane %v1249, 5
        %v1270 = vrot.slane %v1250, 5
        %v1271 = vrot.slane %v1251, 5
        %v1272 = vrot.slane %v1252, 5
        %v1273 = vrot.slane %v1253, 5
        %v1274 = vrot.slane %v1254, 5
        %v1285 = vadd.f32 %v1233, %v1265
        %v1286 = vadd.f32 %v1234, %v1266
        %v1287 = vadd.f32 %v1235, %v1267
        %v1288 = vadd.f32 %v1236, %v1268
        %v1289 = vadd.f32 %v1237, %v1269
        %v1290 = vadd.f32 %v1238, %v1270
        %v1291 = vadd.f32 %v1239, %v1271
        %v1292 = vadd.f32 %v1240, %v1272
        %v1293 = vadd.f32 %v1241, %v1273
        %v1294 = vadd.f32 %v1242, %v1274
        %s1295 = sld [smem:[#allocation3 + $0x106]]
        %v1296 = vstv %s1295
        %v1297 = vmul.f32 %v1296, %v263
        %v1298 = vmul.f32 %v1296, %v264
        %v1299 = vmul.f32 %v1296, %v265
        %v1300 = vmul.f32 %v1296, %v266
        %v1301 = vmul.f32 %v1296, %v267
        %v1302 = vmul.f32 %v1296, %v268
        %v1303 = vmul.f32 %v1296, %v269
        %v1304 = vmul.f32 %v1296, %v270
        %v1305 = vmul.f32 %v1296, %v271
        %v1306 = vmul.f32 %v1296, %v272
        %v1317 = vrot.slane %v1297, 6
        %v1318 = vrot.slane %v1298, 6
        %v1319 = vrot.slane %v1299, 6
        %v1320 = vrot.slane %v1300, 6
        %v1321 = vrot.slane %v1301, 6
        %v1322 = vrot.slane %v1302, 6
        %v1323 = vrot.slane %v1303, 6
        %v1324 = vrot.slane %v1304, 6
        %v1325 = vrot.slane %v1305, 6
        %v1326 = vrot.slane %v1306, 6
        %v1337 = vadd.f32 %v1285, %v1317
        %v1338 = vadd.f32 %v1286, %v1318
        %v1339 = vadd.f32 %v1287, %v1319
        %v1340 = vadd.f32 %v1288, %v1320
        %v1341 = vadd.f32 %v1289, %v1321
        %v1342 = vadd.f32 %v1290, %v1322
        %v1343 = vadd.f32 %v1291, %v1323
        %v1344 = vadd.f32 %v1292, %v1324
        %v1345 = vadd.f32 %v1293, %v1325
        %v1346 = vadd.f32 %v1294, %v1326
        %s1347 = sld [smem:[#allocation8 + $0x2]]
        %v1348 = vmax.f32 %v1337, 0.0
        %v1349 = vmax.f32 %v1338, 0.0
        %v1350 = vmax.f32 %v1339, 0.0
        %v1351 = vmax.f32 %v1340, 0.0
        %v1352 = vmax.f32 %v1341, 0.0
        %v1353 = vmax.f32 %v1342, 0.0
        %v1354 = vmax.f32 %v1343, 0.0
        %v1355 = vmax.f32 %v1344, 0.0
        %v1356 = vmax.f32 %v1345, 0.0
        %v1357 = vmax.f32 %v1346, 0.0
        %v1358 = vstv %s1347
        %v1359 = vmul.f32 %v1358, %v1348
        %v1360 = vmul.f32 %v1358, %v1349
        %v1361 = vmul.f32 %v1358, %v1350
        %v1362 = vmul.f32 %v1358, %v1351
        %v1363 = vmul.f32 %v1358, %v1352
        %v1364 = vmul.f32 %v1358, %v1353
        %v1365 = vmul.f32 %v1358, %v1354
        %v1366 = vmul.f32 %v1358, %v1355
        %v1367 = vmul.f32 %v1358, %v1356
        %v1368 = vmul.f32 %v1358, %v1357
        %v1369 = vadd.f32 %v1001, %v1359
        %v1370 = vadd.f32 %v1002, %v1360
        %v1371 = vadd.f32 %v1003, %v1361
        %v1372 = vadd.f32 %v1004, %v1362
        %v1373 = vadd.f32 %v1005, %v1363
        %v1374 = vadd.f32 %v1006, %v1364
        %v1375 = vadd.f32 %v1007, %v1365
        %v1376 = vadd.f32 %v1008, %v1366
        %v1377 = vadd.f32 %v1009, %v1367
        %v1378 = vadd.f32 %v1010, %v1368
        %s1379 = sld [smem:[#allocation6 + $0x3]]
        %v1380 = vstv %s1379
        %s1381 = sld [smem:[#allocation3 + $0x180]]
        %v1382 = vstv %s1381
        %v1383 = vmul.f32 %v1382, %v263
        %v1384 = vmul.f32 %v1382, %v264
        %v1385 = vmul.f32 %v1382, %v265
        %v1386 = vmul.f32 %v1382, %v266
        %v1387 = vmul.f32 %v1382, %v267
        %v1388 = vmul.f32 %v1382, %v268
        %v1389 = vmul.f32 %v1382, %v269
        %v1390 = vmul.f32 %v1382, %v270
        %v1391 = vmul.f32 %v1382, %v271
        %v1392 = vmul.f32 %v1382, %v272
        %v1393 = vadd.f32 %v1380, %v1383
        %v1394 = vadd.f32 %v1380, %v1384
        %v1395 = vadd.f32 %v1380, %v1385
        %v1396 = vadd.f32 %v1380, %v1386
        %v1397 = vadd.f32 %v1380, %v1387
        %v1398 = vadd.f32 %v1380, %v1388
        %v1399 = vadd.f32 %v1380, %v1389
        %v1400 = vadd.f32 %v1380, %v1390
        %v1401 = vadd.f32 %v1380, %v1391
        %v1402 = vadd.f32 %v1380, %v1392
        %s1403 = sld [smem:[#allocation3 + $0x181]]
        %v1404 = vstv %s1403
        %v1405 = vmul.f32 %v1404, %v263
        %v1406 = vmul.f32 %v1404, %v264
        %v1407 = vmul.f32 %v1404, %v265
        %v1408 = vmul.f32 %v1404, %v266
        %v1409 = vmul.f32 %v1404, %v267
        %v1410 = vmul.f32 %v1404, %v268
        %v1411 = vmul.f32 %v1404, %v269
        %v1412 = vmul.f32 %v1404, %v270
        %v1413 = vmul.f32 %v1404, %v271
        %v1414 = vmul.f32 %v1404, %v272
        %v1425 = vrot.slane %v1405, 1
        %v1426 = vrot.slane %v1406, 1
        %v1427 = vrot.slane %v1407, 1
        %v1428 = vrot.slane %v1408, 1
        %v1429 = vrot.slane %v1409, 1
        %v1430 = vrot.slane %v1410, 1
        %v1431 = vrot.slane %v1411, 1
        %v1432 = vrot.slane %v1412, 1
        %v1433 = vrot.slane %v1413, 1
        %v1434 = vrot.slane %v1414, 1
        %v1445 = vadd.f32 %v1393, %v1425
        %v1446 = vadd.f32 %v1394, %v1426
        %v1447 = vadd.f32 %v1395, %v1427
        %v1448 = vadd.f32 %v1396, %v1428
        %v1449 = vadd.f32 %v1397, %v1429
        %v1450 = vadd.f32 %v1398, %v1430
        %v1451 = vadd.f32 %v1399, %v1431
        %v1452 = vadd.f32 %v1400, %v1432
        %v1453 = vadd.f32 %v1401, %v1433
        %v1454 = vadd.f32 %v1402, %v1434
        %s1455 = sld [smem:[#allocation3 + $0x182]]
        %v1456 = vstv %s1455
        %v1457 = vmul.f32 %v1456, %v263
        %v1458 = vmul.f32 %v1456, %v264
        %v1459 = vmul.f32 %v1456, %v265
        %v1460 = vmul.f32 %v1456, %v266
        %v1461 = vmul.f32 %v1456, %v267
        %v1462 = vmul.f32 %v1456, %v268
        %v1463 = vmul.f32 %v1456, %v269
        %v1464 = vmul.f32 %v1456, %v270
        %v1465 = vmul.f32 %v1456, %v271
        %v1466 = vmul.f32 %v1456, %v272
        %v1477 = vrot.slane %v1457, 2
        %v1478 = vrot.slane %v1458, 2
        %v1479 = vrot.slane %v1459, 2
        %v1480 = vrot.slane %v1460, 2
        %v1481 = vrot.slane %v1461, 2
        %v1482 = vrot.slane %v1462, 2
        %v1483 = vrot.slane %v1463, 2
        %v1484 = vrot.slane %v1464, 2
        %v1485 = vrot.slane %v1465, 2
        %v1486 = vrot.slane %v1466, 2
        %v1497 = vadd.f32 %v1445, %v1477
        %v1498 = vadd.f32 %v1446, %v1478
        %v1499 = vadd.f32 %v1447, %v1479
        %v1500 = vadd.f32 %v1448, %v1480
        %v1501 = vadd.f32 %v1449, %v1481
        %v1502 = vadd.f32 %v1450, %v1482
        %v1503 = vadd.f32 %v1451, %v1483
        %v1504 = vadd.f32 %v1452, %v1484
        %v1505 = vadd.f32 %v1453, %v1485
        %v1506 = vadd.f32 %v1454, %v1486
        %s1507 = sld [smem:[#allocation3 + $0x183]]
        %v1508 = vstv %s1507
        %v1509 = vmul.f32 %v1508, %v263
        %v1510 = vmul.f32 %v1508, %v264
        %v1511 = vmul.f32 %v1508, %v265
        %v1512 = vmul.f32 %v1508, %v266
        %v1513 = vmul.f32 %v1508, %v267
        %v1514 = vmul.f32 %v1508, %v268
        %v1515 = vmul.f32 %v1508, %v269
        %v1516 = vmul.f32 %v1508, %v270
        %v1517 = vmul.f32 %v1508, %v271
        %v1518 = vmul.f32 %v1508, %v272
        %v1529 = vrot.slane %v1509, 3
        %v1530 = vrot.slane %v1510, 3
        %v1531 = vrot.slane %v1511, 3
        %v1532 = vrot.slane %v1512, 3
        %v1533 = vrot.slane %v1513, 3
        %v1534 = vrot.slane %v1514, 3
        %v1535 = vrot.slane %v1515, 3
        %v1536 = vrot.slane %v1516, 3
        %v1537 = vrot.slane %v1517, 3
        %v1538 = vrot.slane %v1518, 3
        %v1549 = vadd.f32 %v1497, %v1529
        %v1550 = vadd.f32 %v1498, %v1530
        %v1551 = vadd.f32 %v1499, %v1531
        %v1552 = vadd.f32 %v1500, %v1532
        %v1553 = vadd.f32 %v1501, %v1533
        %v1554 = vadd.f32 %v1502, %v1534
        %v1555 = vadd.f32 %v1503, %v1535
        %v1556 = vadd.f32 %v1504, %v1536
        %v1557 = vadd.f32 %v1505, %v1537
        %v1558 = vadd.f32 %v1506, %v1538
        %s1559 = sld [smem:[#allocation3 + $0x184]]
        %v1560 = vstv %s1559
        %v1561 = vmul.f32 %v1560, %v263
        %v1562 = vmul.f32 %v1560, %v264
        %v1563 = vmul.f32 %v1560, %v265
        %v1564 = vmul.f32 %v1560, %v266
        %v1565 = vmul.f32 %v1560, %v267
        %v1566 = vmul.f32 %v1560, %v268
        %v1567 = vmul.f32 %v1560, %v269
        %v1568 = vmul.f32 %v1560, %v270
        %v1569 = vmul.f32 %v1560, %v271
        %v1570 = vmul.f32 %v1560, %v272
        %v1581 = vrot.slane %v1561, 4
        %v1582 = vrot.slane %v1562, 4
        %v1583 = vrot.slane %v1563, 4
        %v1584 = vrot.slane %v1564, 4
        %v1585 = vrot.slane %v1565, 4
        %v1586 = vrot.slane %v1566, 4
        %v1587 = vrot.slane %v1567, 4
        %v1588 = vrot.slane %v1568, 4
        %v1589 = vrot.slane %v1569, 4
        %v1590 = vrot.slane %v1570, 4
        %v1601 = vadd.f32 %v1549, %v1581
        %v1602 = vadd.f32 %v1550, %v1582
        %v1603 = vadd.f32 %v1551, %v1583
        %v1604 = vadd.f32 %v1552, %v1584
        %v1605 = vadd.f32 %v1553, %v1585
        %v1606 = vadd.f32 %v1554, %v1586
        %v1607 = vadd.f32 %v1555, %v1587
        %v1608 = vadd.f32 %v1556, %v1588
        %v1609 = vadd.f32 %v1557, %v1589
        %v1610 = vadd.f32 %v1558, %v1590
        %s1611 = sld [smem:[#allocation3 + $0x185]]
        %v1612 = vstv %s1611
        %v1613 = vmul.f32 %v1612, %v263
        %v1614 = vmul.f32 %v1612, %v264
        %v1615 = vmul.f32 %v1612, %v265
        %v1616 = vmul.f32 %v1612, %v266
        %v1617 = vmul.f32 %v1612, %v267
        %v1618 = vmul.f32 %v1612, %v268
        %v1619 = vmul.f32 %v1612, %v269
        %v1620 = vmul.f32 %v1612, %v270
        %v1621 = vmul.f32 %v1612, %v271
        %v1622 = vmul.f32 %v1612, %v272
        %v1633 = vrot.slane %v1613, 5
        %v1634 = vrot.slane %v1614, 5
        %v1635 = vrot.slane %v1615, 5
        %v1636 = vrot.slane %v1616, 5
        %v1637 = vrot.slane %v1617, 5
        %v1638 = vrot.slane %v1618, 5
        %v1639 = vrot.slane %v1619, 5
        %v1640 = vrot.slane %v1620, 5
        %v1641 = vrot.slane %v1621, 5
        %v1642 = vrot.slane %v1622, 5
        %v1653 = vadd.f32 %v1601, %v1633
        %v1654 = vadd.f32 %v1602, %v1634
        %v1655 = vadd.f32 %v1603, %v1635
        %v1656 = vadd.f32 %v1604, %v1636
        %v1657 = vadd.f32 %v1605, %v1637
        %v1658 = vadd.f32 %v1606, %v1638
        %v1659 = vadd.f32 %v1607, %v1639
        %v1660 = vadd.f32 %v1608, %v1640
        %v1661 = vadd.f32 %v1609, %v1641
        %v1662 = vadd.f32 %v1610, %v1642
        %s1663 = sld [smem:[#allocation3 + $0x186]]
        %v1664 = vstv %s1663
        %v1665 = vmul.f32 %v1664, %v263
        %v1666 = vmul.f32 %v1664, %v264
        %v1667 = vmul.f32 %v1664, %v265
        %v1668 = vmul.f32 %v1664, %v266
        %v1669 = vmul.f32 %v1664, %v267
        %v1670 = vmul.f32 %v1664, %v268
        %v1671 = vmul.f32 %v1664, %v269
        %v1672 = vmul.f32 %v1664, %v270
        %v1673 = vmul.f32 %v1664, %v271
        %v1674 = vmul.f32 %v1664, %v272
        %v1685 = vrot.slane %v1665, 6
        %v1686 = vrot.slane %v1666, 6
        %v1687 = vrot.slane %v1667, 6
        %v1688 = vrot.slane %v1668, 6
        %v1689 = vrot.slane %v1669, 6
        %v1690 = vrot.slane %v1670, 6
        %v1691 = vrot.slane %v1671, 6
        %v1692 = vrot.slane %v1672, 6
        %v1693 = vrot.slane %v1673, 6
        %v1694 = vrot.slane %v1674, 6
        %v1705 = vadd.f32 %v1653, %v1685
        %v1706 = vadd.f32 %v1654, %v1686
        %v1707 = vadd.f32 %v1655, %v1687
        %v1708 = vadd.f32 %v1656, %v1688
        %v1709 = vadd.f32 %v1657, %v1689
        %v1710 = vadd.f32 %v1658, %v1690
        %v1711 = vadd.f32 %v1659, %v1691
        %v1712 = vadd.f32 %v1660, %v1692
        %v1713 = vadd.f32 %v1661, %v1693
        %v1714 = vadd.f32 %v1662, %v1694
        %s1715 = sld [smem:[#allocation8 + $0x3]]
        %v1716 = vmax.f32 %v1705, 0.0
        %v1717 = vmax.f32 %v1706, 0.0
        %v1718 = vmax.f32 %v1707, 0.0
        %v1719 = vmax.f32 %v1708, 0.0
        %v1720 = vmax.f32 %v1709, 0.0
        %v1721 = vmax.f32 %v1710, 0.0
        %v1722 = vmax.f32 %v1711, 0.0
        %v1723 = vmax.f32 %v1712, 0.0
        %v1724 = vmax.f32 %v1713, 0.0
        %v1725 = vmax.f32 %v1714, 0.0
        %v1726 = vstv %s1715
        %v1727 = vmul.f32 %v1726, %v1716
        %v1728 = vmul.f32 %v1726, %v1717
        %v1729 = vmul.f32 %v1726, %v1718
        %v1730 = vmul.f32 %v1726, %v1719
        %v1731 = vmul.f32 %v1726, %v1720
        %v1732 = vmul.f32 %v1726, %v1721
        %v1733 = vmul.f32 %v1726, %v1722
        %v1734 = vmul.f32 %v1726, %v1723
        %v1735 = vmul.f32 %v1726, %v1724
        %v1736 = vmul.f32 %v1726, %v1725
        %v1737 = vadd.f32 %v1369, %v1727
        %v1738 = vadd.f32 %v1370, %v1728
        %v1739 = vadd.f32 %v1371, %v1729
        %v1740 = vadd.f32 %v1372, %v1730
        %v1741 = vadd.f32 %v1373, %v1731
        %v1742 = vadd.f32 %v1374, %v1732
        %v1743 = vadd.f32 %v1375, %v1733
        %v1744 = vadd.f32 %v1376, %v1734
        %v1745 = vadd.f32 %v1377, %v1735
        %v1746 = vadd.f32 %v1378, %v1736
        %v1757 = vcombine.low %v1737, %v1738
        %v1758 = vcombine.low %v1739, %v1740
        %v1759 = vcombine.low %v1741, %v1742
        %v1760 = vcombine.low %v1743, %v1744
        %v1762 = vunpack.c.l.s4 1966171168
        %v1763 = vunpack.c.0.s8 %v1762
        %v1764 = vlaneseq
        %v1765 = vshrl.u32 %v1764, 7
        %v1766 = vsub.s32 %v1763, %v1765
        %v1767 = vrot.slane %v1757, %v1766
        %v1769 = vunpack.c.l.s4 1966171168
        %v1770 = vunpack.c.0.s8 %v1769
        %v1771 = vlaneseq
        %v1772 = vshrl.u32 %v1771, 7
        %v1773 = vsub.s32 %v1770, %v1772
        %v1774 = vrot.slane %v1758, %v1773
        %v1776 = vunpack.c.l.s4 1966171168
        %v1777 = vunpack.c.0.s8 %v1776
        %v1778 = vlaneseq
        %v1779 = vshrl.u32 %v1778, 7
        %v1780 = vsub.s32 %v1777, %v1779
        %v1781 = vrot.slane %v1759, %v1780
        %v1783 = vunpack.c.l.s4 1966171168
        %v1784 = vunpack.c.0.s8 %v1783
        %v1785 = vlaneseq
        %v1786 = vshrl.u32 %v1785, 7
        %v1787 = vsub.s32 %v1784, %v1786
        %v1788 = vrot.slane %v1760, %v1787
        %v1789 = vcombine.low %v1767, %v1774
        %v1790 = vcombine.low %v1781, %v1788
        %v1792 = vunpack.c.l.s4 1966171168
        %v1793 = vunpack.c.0.s8 %v1792
        %v1794 = vlaneseq
        %v1795 = vshrl.u32 %v1794, 7
        %v1796 = vsub.s32 %v1793, %v1795
        %v1797 = vrot.slane %v1789, %v1796
        %v1799 = vunpack.c.l.s4 1966171168
        %v1800 = vunpack.c.0.s8 %v1799
        %v1801 = vlaneseq
        %v1802 = vshrl.u32 %v1801, 7
        %v1803 = vsub.s32 %v1800, %v1802
        %v1804 = vrot.slane %v1790, %v1803
        %v1805 = vcombine.low %v1797, %v1804
        %v1806 = vcombine.low %v1745, %v1746
        %v1808 = vunpack.c.l.s4 1966171168
        %v1809 = vunpack.c.0.s8 %v1808
        %v1810 = vlaneseq
        %v1811 = vshrl.u32 %v1810, 7
        %v1812 = vsub.s32 %v1809, %v1811
        %v1813 = vrot.slane %v1806, %v1812
        %v1815 = vunpack.c.l.s4 1966171168
        %v1816 = vunpack.c.0.s8 %v1815
        %v1817 = vlaneseq
        %v1818 = vshrl.u32 %v1817, 7
        %v1819 = vsub.s32 %v1816, %v1818
        %v1820 = vrot.slane %v1813, %v1819
        %1823 = vst [vmem:[%s257] sm:$0xff] %v1805
        %v1824 = vlaneseq
        %vm1825 = vcmp.ge.s32.totalorder %v1824, 0
        %vm1826 = vcmp.lt.s32.totalorder %v1824, 176
        %vm1827 = vmand %vm1825, %vm1826
        %1828 = vst.msk [vmem:[%s257 + $0x8] sm:$0x3] %vm1827, %v1820
        %s1829 = sand.u32 %s140, 1
        %s1830 = scalar_lea.sflag [#allocation4], %s1829
        %s1831 = sand.u32 %s140, 1
        %s1832 = smul.addr %s1831, 10
        %s1833 = scalar_lea.vmem [#allocation9], %s1832
        // Predicated region
        $region53: #{tpu_custom_call.1} parent=39 // pred_check
          %p1834 = pneg %p150
        $region54: #{tpu_custom_call.1} parent=39 // pred_check_branch
          %1836 = sbr.rel (%p1834) target = $region56
        $region55: #{tpu_custom_call.1} parent=39 // pred_region
          %s1838 = ssub.s32 160, 160
          %1839 = vsyncadd %s1830, %s1838
          %s1840 = smul.addr %s22, 10
          %s1841 = smul.addr %s1840, 16
          %s1842 = scalar_lea.hbm %s5, %s1841
          %s1844 = sshll.u32 %s1833, 4
          %s1845 = int_to_ptr.vmem [resolvable:$true] %s1844
          %1847 = dma.vmem_to_hbm [thread:$0]  %s1845, 160, %s1842, %s1830
        $region56: #{tpu_custom_call.1} parent=39 // pred_fallthru
          _
      $region40: #{tpu_custom_call.1} parent=5 // pred_fallthru
        _
      %p1848 = scmp.le.s32.totalorder 2, %s17
      // Predicated region
      $region57: #{tpu_custom_call.1} parent=5 // pred_check
        %p1849 = pneg %p1848
      $region58: #{tpu_custom_call.1} parent=5 // pred_check_branch
        %1851 = sbr.rel (%p1849) target = $region60
      $region59: #{tpu_custom_call.1} parent=5 // pred_region
        %s1852 = ssub.s32 %s17, 2
        // Predicated region
        $region61: #{tpu_custom_call.1} parent=59 // pred_check
          %p1853 = pneg %p156
        $region62: #{tpu_custom_call.1} parent=59 // pred_check_branch
          %1855 = sbr.rel (%p1853) target = $region64
        $region63: #{tpu_custom_call.1} parent=59 // pred_region
          %s1856 = sand.u32 %s141, 1
          %s1857 = scalar_lea.sflag [#allocation4], %s1856
          %s1858 = sand.u32 %s141, 1
          %s1859 = smul.addr %s1858, 10
          %s1860 = scalar_lea.vmem [#allocation9], %s1859
          %1861 = dma.done %s1857, 160
        $region64: #{tpu_custom_call.1} parent=59 // pred_fallthru
          _
      $region60: #{tpu_custom_call.1} parent=5 // pred_fallthru
        _
    $region6: #{tpu_custom_call.1} parent=1 // loop_footer
      %s21 = sadd.s32 1, %s17
    $region7: #{tpu_custom_call.1} parent=1 // loop_footer_branch
      %16 = sbr.rel target = $region3
    $region8: #{tpu_custom_call.1} parent=1 // loop_exit
      _
    %1862 = vsyncpa [#allocation4], 1
    %s1863 = scalar_lea.sflag [#allocation4], 1
    %1864 = vsyncpa %s1863, 1
    %1865 = vsyncpa [#allocation5], 1
    %s1866 = scalar_lea.sflag [#allocation5], 1
    %1867 = vsyncpa %s1866, 1
    %1868 = vsyncpa [#allocation7], 1

</llo_original>
